<compile_context>
chip_gen: v7x
topology: tpu7x:2x2x1
jax: 0.10.0
libtpu: 0.0.40
codegen_flags: <defaults>
</compile_context>

<pallas_src>
import jax
import jax.numpy as jnp
from jax.experimental import pallas as pl
from jax.experimental.pallas import tpu as pltpu


# Scaled-down layer widths mirroring the original
#   3*100*100 -> 15000 -> 7500 -> 3500 -> 1200 -> 600 -> 300 -> 150 -> 75 -> 2
# Here: 3*16*16 = 768 input features, tile-friendly hidden sizes, 2 classes.
LAYER_DIMS = [3 * 16 * 16, 384, 256, 128, 128, 128, 128, 128, 128, 2]

_B_ALL_WIDTH = 384   # widest layer output -> one packed bias array (9, 384)
_N_LAST_PAD = 128    # lane-dense padded width of the final (2-class) layer
_NEG = -1.0e30       # pad-logit bias so softmax over padded lanes stays exact


# ----------------------------------------------------------------------------
# Fused full-network kernel: 9 x (bf16 matmul + f32 bias + ReLU), final Softmax
# ----------------------------------------------------------------------------
def _cd_net_kernel(x_ref, w1_ref, w2_ref, w3_ref, wstack_ref, b_ref, o_ref):
    def dense(x_f32, w_bf16, row, n_out, relu):
        b = b_ref[row:row + 1, 0:n_out]                    # (1, n_out) f32
        y = jnp.dot(x_f32.astype(jnp.bfloat16), w_bf16,    # bf16 MXU inputs
                    preferred_element_type=jnp.float32) + b
        return jnp.maximum(y, 0.0) if relu else y

    x = x_ref[...]                                         # (TM, 768) f32
    x = dense(x, w1_ref[...], 0, 384, True)                # 768 -> 384
    x = dense(x, w2_ref[...], 1, 256, True)                # 384 -> 256
    x = dense(x, w3_ref[...], 2, 128, True)                # 256 -> 128
    for li in range(5):                                    # layers 4..8: 128 -> 128
        x = dense(x, wstack_ref[li], 3 + li, 128, True)
    # Layer 9: real N=2 padded to 128; pad columns get bias -1e30 -> exp == 0,
    # so the row softmax is exact over the 2 real classes.
    y = dense(x, wstack_ref[5], 8, _N_LAST_PAD, False)

    m = jnp.max(y, axis=-1, keepdims=True)
    e = jnp.exp(y - m)
    o_ref[...] = (e / jnp.sum(e, axis=-1, keepdims=True)).astype(o_ref.dtype)


def _cd_net_pallas(x_padded, packed):
    """x_padded: (M, K0) f32, M a multiple of 16 (and of the M tile)."""
    w1, w2, w3, w_stack, b_all = packed
    M, K0 = x_padded.shape
    tm = min(256, M)
    assert M % tm == 0, (M, tm)

    dims = LAYER_DIMS
    flops = 2 * M * sum(dims[i] * dims[i + 1] for i in range(len(dims) - 1))
    bytes_accessed = (x_padded.size * 4 + (w1.size + w2.size + w3.size
                      + w_stack.size) * 2 + b_all.size * 4 + M * _N_LAST_PAD * 4)
    cost = pl.CostEstimate(flops=flops, transcendentals=M * _N_LAST_PAD,
                           bytes_accessed=bytes_accessed)

    return pl.pallas_call(
        _cd_net_kernel,
        out_shape=jax.ShapeDtypeStruct((M, _N_LAST_PAD), jnp.float32),
        grid_spec=pltpu.PrefetchScalarGridSpec(
            num_scalar_prefetch=0,
            grid=(M // tm,),
            in_specs=[
                pl.BlockSpec((tm, K0), lambda i: (i, 0)),       # activations: tiled over M
                pl.BlockSpec(w1.shape, lambda i: (0, 0)),       # weights/biases: constant
                pl.BlockSpec(w2.shape, lambda i: (0, 0)),       # index maps -> fetched once,
                pl.BlockSpec(w3.shape, lambda i: (0, 0)),       # VMEM-resident across steps
                pl.BlockSpec(w_stack.shape, lambda i: (0, 0, 0)),
                pl.BlockSpec(b_all.shape, lambda i: (0, 0)),
            ],
            out_specs=pl.BlockSpec((tm, _N_LAST_PAD), lambda i: (i, 0)),
        ),
        compiler_params=pltpu.CompilerParams(
            dimension_semantics=("parallel",)),                 # 2 TCs on v7x
        cost_estimate=cost,
    )(x_padded, w1, w2, w3, w_stack, b_all)


# ----------------------------------------------------------------------------
# Parameter init / packing
# ----------------------------------------------------------------------------
def init_params(key, dims):
    """PyTorch-style uniform(+-1/sqrt(fan_in)) init.

    Weights are generated in torch layout (out, in), transposed ONCE to (K, N)
    and stored in bf16 (the dominant HBM traffic).  Biases stay f32.
    """
    params = []
    for i in range(len(dims) - 1):
        fan_in, fan_out = dims[i], dims[i + 1]
        key, kw, kb = jax.random.split(key, 3)
        bound = 1.0 / jnp.sqrt(jnp.float32(fan_in))
        w = jax.random.uniform(kw, (fan_out, fan_in), jnp.float32,
                               minval=-bound, maxval=bound)
        b = jax.random.uniform(kb, (fan_out,), jnp.float32,
                               minval=-bound, maxval=bound)
        params.append((jnp.transpose(w).astype(jnp.bfloat16), b))
    return params


def pack_params(params):
    """Collapse 18 weight/bias arrays into 5 kernel inputs (one-time, host side)."""
    w1, w2, w3 = params[0][0], params[1][0], params[2][0]
    # Final (128, 2) weight padded to (128, 128) with zero columns (lane-dense).
    w9 = jnp.zeros((LAYER_DIMS[-2], _N_LAST_PAD), jnp.bfloat16)
    w9 = w9.at[:, :LAYER_DIMS[-1]].set(params[8][0])
    w_stack = jnp.stack([params[i][0] for i in range(3, 8)] + [w9])  # (6,128,128)

    rows = []
    for i, (_, b) in enumerate(params):
        fill = _NEG if i == len(params) - 1 else 0.0  # -1e30 masks the padded classes
        row = jnp.full((_B_ALL_WIDTH,), fill, jnp.float32).at[:b.shape[0]].set(b)
        rows.append(row)
    b_all = jnp.stack(rows)                                           # (9, 384) f32
    return (w1, w2, w3, w_stack, b_all)


# ----------------------------------------------------------------------------
# CD_Net forward
# ----------------------------------------------------------------------------
@jax.jit
def cd_net_forward(x_nchw, packed):
    """x_nchw: (B, 3, H, W) float32 -> (B, 2) softmax probabilities."""
    B = x_nchw.shape[0]
    x = x_nchw.reshape(B, -1).astype(jnp.float32)   # flatten NCHW -> (B, 3*H*W)

    # Pad batch to a multiple of 16 (bf16 sublane packing at the dot operands)
    # and, for larger batches, to a multiple of the 256-row M tile.
    m16 = max(16, ((B + 15) // 16) * 16)
    tm = min(256, m16)
    M = ((m16 + tm - 1) // tm) * tm
    if M != B:
        x = jnp.pad(x, ((0, M - B), (0, 0)))

    out = _cd_net_pallas(x, packed)                 # (M, 128) lane-dense slab
    return out[:B, :LAYER_DIMS[-1]]


def cd_net_reference(x_nchw, params):
    """Pure-JAX reference with the same numerics (bf16 dot operands, f32 acc)."""
    B = x_nchw.shape[0]
    x = x_nchw.reshape(B, -1).astype(jnp.float32)
    n_layers = len(params)
    for li, (w_t, b) in enumerate(params):
        y = jnp.dot(x.astype(jnp.bfloat16), w_t,
                    preferred_element_type=jnp.float32) + b
        x = jax.nn.softmax(y, axis=1) if li == n_layers - 1 else jnp.maximum(y, 0.0)
    return x


if __name__ == "__main__":
    key = jax.random.PRNGKey(0)
    k_params, k_x = jax.random.split(key)

    params = init_params(k_params, LAYER_DIMS)
    packed = pack_params(params)

    # Small deterministic input: batch=2, channels=3, spatial=16x16 (NCHW).
    x = jax.random.normal(k_x, (2, 3, 16, 16), dtype=jnp.float32)

    out = jax.block_until_ready(cd_net_forward(x, packed))
    ref = jax.block_until_ready(cd_net_reference(x, params))

    assert out.shape == (2, 2), out.shape
    # Rows are valid probability distributions (exact softmax division).
    assert jnp.allclose(jnp.sum(out, axis=1), 1.0, atol=1e-3)
    assert jnp.allclose(out, ref, atol=2e-3, rtol=2e-3)

    print("KERNEL_OK")
</pallas_src>

<mosaic_0001>
module attributes {stable_mosaic.version = 11 : i64} {
  func.func @_cd_net_kernel(%arg0: i32, %arg1: memref<16x768xf32, #tpu.memory_space<vmem>>, %arg2: memref<768x384xbf16, #tpu.memory_space<vmem>>, %arg3: memref<384x256xbf16, #tpu.memory_space<vmem>>, %arg4: memref<256x128xbf16, #tpu.memory_space<vmem>>, %arg5: memref<6x128x128xbf16, #tpu.memory_space<vmem>>, %arg6: memref<9x384xf32, #tpu.memory_space<vmem>>, %arg7: memref<16x128xf32, #tpu.memory_space<vmem>>) attributes {dimension_semantics = [#tpu.dimension_semantics<parallel>], iteration_bounds = array<i64: 1>, scalar_prefetch = 0 : i64, scratch_operands = 0 : i64, tpu.core_type = #tpu.core_type<tc>, window_params = [{transform_indices = @transform_0, window_bounds = array<i64: 16, 768>}, {pipeline_mode = #tpu.pipeline_mode<synchronous>, transform_indices = @transform_1, window_bounds = array<i64: 768, 384>}, {pipeline_mode = #tpu.pipeline_mode<synchronous>, transform_indices = @transform_2, window_bounds = array<i64: 384, 256>}, {pipeline_mode = #tpu.pipeline_mode<synchronous>, transform_indices = @transform_3, window_bounds = array<i64: 256, 128>}, {pipeline_mode = #tpu.pipeline_mode<synchronous>, transform_indices = @transform_4, window_bounds = array<i64: 6, 128, 128>}, {pipeline_mode = #tpu.pipeline_mode<synchronous>, transform_indices = @transform_5, window_bounds = array<i64: 9, 384>}, {transform_indices = @transform_6, window_bounds = array<i64: 16, 128>}]} {
    %c0 = arith.constant 0 : index
    %c0_0 = arith.constant 0 : index
    %0 = vector.load %arg1[%c0, %c0_0] : memref<16x768xf32, #tpu.memory_space<vmem>>, vector<16x768xf32>
    %c0_1 = arith.constant 0 : index
    %c0_2 = arith.constant 0 : index
    %1 = vector.load %arg2[%c0_1, %c0_2] : memref<768x384xbf16, #tpu.memory_space<vmem>>, vector<768x384xbf16>
    %c0_3 = arith.constant 0 : index
    %c0_4 = arith.constant 0 : index
    %2 = vector.load %arg6[%c0_3, %c0_4] : memref<9x384xf32, #tpu.memory_space<vmem>>, vector<1x384xf32>
    %3 = arith.truncf %0 : vector<16x768xf32> to vector<16x768xbf16>
    %cst = arith.constant dense<0.000000e+00> : vector<16x384xf32>
    %4 = tpu.matmul %3, %1, %cst {dimension_numbers = #tpu.dot_dimension_numbers<[1], [0], [0], [1], [0, 0, 1, 1], [], []>} : vector<16x768xbf16>, vector<768x384xbf16>, vector<16x384xf32> -> vector<16x384xf32>
    %5 = vector.broadcast %2 : vector<1x384xf32> to vector<16x384xf32>
    %6 = arith.addf %4, %5 : vector<16x384xf32>
    %cst_5 = arith.constant 0.000000e+00 : f32
    %7 = vector.broadcast %cst_5 : f32 to vector<16x384xf32>
    %8 = arith.maximumf %6, %7 : vector<16x384xf32>
    %c0_6 = arith.constant 0 : index
    %c0_7 = arith.constant 0 : index
    %9 = vector.load %arg3[%c0_6, %c0_7] : memref<384x256xbf16, #tpu.memory_space<vmem>>, vector<384x256xbf16>
    %c1 = arith.constant 1 : index
    %c0_8 = arith.constant 0 : index
    %10 = vector.load %arg6[%c1, %c0_8] : memref<9x384xf32, #tpu.memory_space<vmem>>, vector<1x256xf32>
    %11 = arith.truncf %8 : vector<16x384xf32> to vector<16x384xbf16>
    %cst_9 = arith.constant dense<0.000000e+00> : vector<16x256xf32>
    %12 = tpu.matmul %11, %9, %cst_9 {dimension_numbers = #tpu.dot_dimension_numbers<[1], [0], [0], [1], [0, 0, 1, 1], [], []>} : vector<16x384xbf16>, vector<384x256xbf16>, vector<16x256xf32> -> vector<16x256xf32>
    %13 = vector.broadcast %10 : vector<1x256xf32> to vector<16x256xf32>
    %14 = arith.addf %12, %13 : vector<16x256xf32>
    %cst_10 = arith.constant 0.000000e+00 : f32
    %15 = vector.broadcast %cst_10 : f32 to vector<16x256xf32>
    %16 = arith.maximumf %14, %15 : vector<16x256xf32>
    %c0_11 = arith.constant 0 : index
    %c0_12 = arith.constant 0 : index
    %17 = vector.load %arg4[%c0_11, %c0_12] : memref<256x128xbf16, #tpu.memory_space<vmem>>, vector<256x128xbf16>
    %c2 = arith.constant 2 : index
    %c0_13 = arith.constant 0 : index
    %18 = vector.load %arg6[%c2, %c0_13] : memref<9x384xf32, #tpu.memory_space<vmem>>, vector<1x128xf32>
    %19 = arith.truncf %16 : vector<16x256xf32> to vector<16x256xbf16>
    %cst_14 = arith.constant dense<0.000000e+00> : vector<16x128xf32>
    %20 = tpu.matmul %19, %17, %cst_14 {dimension_numbers = #tpu.dot_dimension_numbers<[1], [0], [0], [1], [0, 0, 1, 1], [], []>} : vector<16x256xbf16>, vector<256x128xbf16>, vector<16x128xf32> -> vector<16x128xf32>
    %21 = vector.broadcast %18 : vector<1x128xf32> to vector<16x128xf32>
    %22 = arith.addf %20, %21 : vector<16x128xf32>
    %cst_15 = arith.constant 0.000000e+00 : f32
    %23 = vector.broadcast %cst_15 : f32 to vector<16x128xf32>
    %24 = arith.maximumf %22, %23 : vector<16x128xf32>
    %c0_16 = arith.constant 0 : index
    %c0_17 = arith.constant 0 : index
    %c0_18 = arith.constant 0 : index
    %25 = vector.load %arg5[%c0_16, %c0_17, %c0_18] : memref<6x128x128xbf16, #tpu.memory_space<vmem>>, vector<1x128x128xbf16>
    %26 = vector.shape_cast %25 : vector<1x128x128xbf16> to vector<128x128xbf16>
    %c3 = arith.constant 3 : index
    %c0_19 = arith.constant 0 : index
    %27 = vector.load %arg6[%c3, %c0_19] : memref<9x384xf32, #tpu.memory_space<vmem>>, vector<1x128xf32>
    %28 = arith.truncf %24 : vector<16x128xf32> to vector<16x128xbf16>
    %cst_20 = arith.constant dense<0.000000e+00> : vector<16x128xf32>
    %29 = tpu.matmul %28, %26, %cst_20 {dimension_numbers = #tpu.dot_dimension_numbers<[1], [0], [0], [1], [0, 0, 1, 1], [], []>} : vector<16x128xbf16>, vector<128x128xbf16>, vector<16x128xf32> -> vector<16x128xf32>
    %30 = vector.broadcast %27 : vector<1x128xf32> to vector<16x128xf32>
    %31 = arith.addf %29, %30 : vector<16x128xf32>
    %cst_21 = arith.constant 0.000000e+00 : f32
    %32 = vector.broadcast %cst_21 : f32 to vector<16x128xf32>
    %33 = arith.maximumf %31, %32 : vector<16x128xf32>
    %c1_22 = arith.constant 1 : index
    %c0_23 = arith.constant 0 : index
    %c0_24 = arith.constant 0 : index
    %34 = vector.load %arg5[%c1_22, %c0_23, %c0_24] : memref<6x128x128xbf16, #tpu.memory_space<vmem>>, vector<1x128x128xbf16>
    %35 = vector.shape_cast %34 : vector<1x128x128xbf16> to vector<128x128xbf16>
    %c4 = arith.constant 4 : index
    %c0_25 = arith.constant 0 : index
    %36 = vector.load %arg6[%c4, %c0_25] : memref<9x384xf32, #tpu.memory_space<vmem>>, vector<1x128xf32>
    %37 = arith.truncf %33 : vector<16x128xf32> to vector<16x128xbf16>
    %cst_26 = arith.constant dense<0.000000e+00> : vector<16x128xf32>
    %38 = tpu.matmul %37, %35, %cst_26 {dimension_numbers = #tpu.dot_dimension_numbers<[1], [0], [0], [1], [0, 0, 1, 1], [], []>} : vector<16x128xbf16>, vector<128x128xbf16>, vector<16x128xf32> -> vector<16x128xf32>
    %39 = vector.broadcast %36 : vector<1x128xf32> to vector<16x128xf32>
    %40 = arith.addf %38, %39 : vector<16x128xf32>
    %cst_27 = arith.constant 0.000000e+00 : f32
    %41 = vector.broadcast %cst_27 : f32 to vector<16x128xf32>
    %42 = arith.maximumf %40, %41 : vector<16x128xf32>
    %c2_28 = arith.constant 2 : index
    %c0_29 = arith.constant 0 : index
    %c0_30 = arith.constant 0 : index
    %43 = vector.load %arg5[%c2_28, %c0_29, %c0_30] : memref<6x128x128xbf16, #tpu.memory_space<vmem>>, vector<1x128x128xbf16>
    %44 = vector.shape_cast %43 : vector<1x128x128xbf16> to vector<128x128xbf16>
    %c5 = arith.constant 5 : index
    %c0_31 = arith.constant 0 : index
    %45 = vector.load %arg6[%c5, %c0_31] : memref<9x384xf32, #tpu.memory_space<vmem>>, vector<1x128xf32>
    %46 = arith.truncf %42 : vector<16x128xf32> to vector<16x128xbf16>
    %cst_32 = arith.constant dense<0.000000e+00> : vector<16x128xf32>
    %47 = tpu.matmul %46, %44, %cst_32 {dimension_numbers = #tpu.dot_dimension_numbers<[1], [0], [0], [1], [0, 0, 1, 1], [], []>} : vector<16x128xbf16>, vector<128x128xbf16>, vector<16x128xf32> -> vector<16x128xf32>
    %48 = vector.broadcast %45 : vector<1x128xf32> to vector<16x128xf32>
    %49 = arith.addf %47, %48 : vector<16x128xf32>
    %cst_33 = arith.constant 0.000000e+00 : f32
    %50 = vector.broadcast %cst_33 : f32 to vector<16x128xf32>
    %51 = arith.maximumf %49, %50 : vector<16x128xf32>
    %c3_34 = arith.constant 3 : index
    %c0_35 = arith.constant 0 : index
    %c0_36 = arith.constant 0 : index
    %52 = vector.load %arg5[%c3_34, %c0_35, %c0_36] : memref<6x128x128xbf16, #tpu.memory_space<vmem>>, vector<1x128x128xbf16>
    %53 = vector.shape_cast %52 : vector<1x128x128xbf16> to vector<128x128xbf16>
    %c6 = arith.constant 6 : index
    %c0_37 = arith.constant 0 : index
    %54 = vector.load %arg6[%c6, %c0_37] : memref<9x384xf32, #tpu.memory_space<vmem>>, vector<1x128xf32>
    %55 = arith.truncf %51 : vector<16x128xf32> to vector<16x128xbf16>
    %cst_38 = arith.constant dense<0.000000e+00> : vector<16x128xf32>
    %56 = tpu.matmul %55, %53, %cst_38 {dimension_numbers = #tpu.dot_dimension_numbers<[1], [0], [0], [1], [0, 0, 1, 1], [], []>} : vector<16x128xbf16>, vector<128x128xbf16>, vector<16x128xf32> -> vector<16x128xf32>
    %57 = vector.broadcast %54 : vector<1x128xf32> to vector<16x128xf32>
    %58 = arith.addf %56, %57 : vector<16x128xf32>
    %cst_39 = arith.constant 0.000000e+00 : f32
    %59 = vector.broadcast %cst_39 : f32 to vector<16x128xf32>
    %60 = arith.maximumf %58, %59 : vector<16x128xf32>
    %c4_40 = arith.constant 4 : index
    %c0_41 = arith.constant 0 : index
    %c0_42 = arith.constant 0 : index
    %61 = vector.load %arg5[%c4_40, %c0_41, %c0_42] : memref<6x128x128xbf16, #tpu.memory_space<vmem>>, vector<1x128x128xbf16>
    %62 = vector.shape_cast %61 : vector<1x128x128xbf16> to vector<128x128xbf16>
    %c7 = arith.constant 7 : index
    %c0_43 = arith.constant 0 : index
    %63 = vector.load %arg6[%c7, %c0_43] : memref<9x384xf32, #tpu.memory_space<vmem>>, vector<1x128xf32>
    %64 = arith.truncf %60 : vector<16x128xf32> to vector<16x128xbf16>
    %cst_44 = arith.constant dense<0.000000e+00> : vector<16x128xf32>
    %65 = tpu.matmul %64, %62, %cst_44 {dimension_numbers = #tpu.dot_dimension_numbers<[1], [0], [0], [1], [0, 0, 1, 1], [], []>} : vector<16x128xbf16>, vector<128x128xbf16>, vector<16x128xf32> -> vector<16x128xf32>
    %66 = vector.broadcast %63 : vector<1x128xf32> to vector<16x128xf32>
    %67 = arith.addf %65, %66 : vector<16x128xf32>
    %cst_45 = arith.constant 0.000000e+00 : f32
    %68 = vector.broadcast %cst_45 : f32 to vector<16x128xf32>
    %69 = arith.maximumf %67, %68 : vector<16x128xf32>
    %c5_46 = arith.constant 5 : index
    %c0_47 = arith.constant 0 : index
    %c0_48 = arith.constant 0 : index
    %70 = vector.load %arg5[%c5_46, %c0_47, %c0_48] : memref<6x128x128xbf16, #tpu.memory_space<vmem>>, vector<1x128x128xbf16>
    %71 = vector.shape_cast %70 : vector<1x128x128xbf16> to vector<128x128xbf16>
    %c8 = arith.constant 8 : index
    %c0_49 = arith.constant 0 : index
    %72 = vector.load %arg6[%c8, %c0_49] : memref<9x384xf32, #tpu.memory_space<vmem>>, vector<1x128xf32>
    %73 = arith.truncf %69 : vector<16x128xf32> to vector<16x128xbf16>
    %cst_50 = arith.constant dense<0.000000e+00> : vector<16x128xf32>
    %74 = tpu.matmul %73, %71, %cst_50 {dimension_numbers = #tpu.dot_dimension_numbers<[1], [0], [0], [1], [0, 0, 1, 1], [], []>} : vector<16x128xbf16>, vector<128x128xbf16>, vector<16x128xf32> -> vector<16x128xf32>
    %75 = vector.broadcast %72 : vector<1x128xf32> to vector<16x128xf32>
    %76 = arith.addf %74, %75 : vector<16x128xf32>
    %cst_51 = arith.constant dense<0xFF800000> : vector<16xf32>
    %77 = vector.multi_reduction <maximumf>, %76, %cst_51 [1] : vector<16x128xf32> to vector<16xf32>
    %78 = vector.shape_cast %77 : vector<16xf32> to vector<16x1xf32>
    %79 = vector.broadcast %78 : vector<16x1xf32> to vector<16x128xf32>
    %80 = arith.subf %76, %79 : vector<16x128xf32>
    %81 = math.exp %80 : vector<16x128xf32>
    %cst_52 = arith.constant dense<0.000000e+00> : vector<16xf32>
    %82 = vector.multi_reduction <add>, %81, %cst_52 [1] : vector<16x128xf32> to vector<16xf32>
    %83 = vector.shape_cast %82 : vector<16xf32> to vector<16x1xf32>
    %84 = vector.broadcast %83 : vector<16x1xf32> to vector<16x128xf32>
    %85 = arith.divf %81, %84 : vector<16x128xf32>
    %c0_53 = arith.constant 0 : index
    %c0_54 = arith.constant 0 : index
    %86 = vector.load %arg7[%c0_53, %c0_54] : memref<16x128xf32, #tpu.memory_space<vmem>>, vector<16x128xf32>
    tpu.vector_store %arg7[%c0_53, %c0_54], %85 {strides = array<i32>} : memref<16x128xf32, #tpu.memory_space<vmem>>, vector<16x128xf32>,
    return
  }
  func.func @transform_0(%arg0: i32) -> (i32, i32) {
    %c0_i32 = arith.constant 0 : i32
    %c0_i32_0 = arith.constant 0 : i32
    return %arg0, %c0_i32 : i32, i32
  }
  func.func @transform_1(%arg0: i32) -> (i32, i32) {
    %c0_i32 = arith.constant 0 : i32
    %c0_i32_0 = arith.constant 0 : i32
    %c0_i32_1 = arith.constant 0 : i32
    return %c0_i32, %c0_i32_0 : i32, i32
  }
  func.func @transform_2(%arg0: i32) -> (i32, i32) {
    %c0_i32 = arith.constant 0 : i32
    %c0_i32_0 = arith.constant 0 : i32
    %c0_i32_1 = arith.constant 0 : i32
    return %c0_i32, %c0_i32_0 : i32, i32
  }
  func.func @transform_3(%arg0: i32) -> (i32, i32) {
    %c0_i32 = arith.constant 0 : i32
    %c0_i32_0 = arith.constant 0 : i32
    %c0_i32_1 = arith.constant 0 : i32
    return %c0_i32, %c0_i32_0 : i32, i32
  }
  func.func @transform_4(%arg0: i32) -> (i32, i32, i32) {
    %c0_i32 = arith.constant 0 : i32
    %c0_i32_0 = arith.constant 0 : i32
    %c0_i32_1 = arith.constant 0 : i32
    %c0_i32_2 = arith.constant 0 : i32
    return %c0_i32, %c0_i32_0, %c0_i32_1 : i32, i32, i32
  }
  func.func @transform_5(%arg0: i32) -> (i32, i32) {
    %c0_i32 = arith.constant 0 : i32
    %c0_i32_0 = arith.constant 0 : i32
    %c0_i32_1 = arith.constant 0 : i32
    return %c0_i32, %c0_i32_0 : i32, i32
  }
  func.func @transform_6(%arg0: i32) -> (i32, i32) {
    %c0_i32 = arith.constant 0 : i32
    %c0_i32_0 = arith.constant 0 : i32
    return %arg0, %c0_i32 : i32, i32
  }
}

</mosaic_0001>

<llo_original>
// kernel: cd_net_forward.1
$region0: #{cd_net_forward.1}
  #allocation0 [shape = 'u32[]', space=smem, size = 0x4, offset = 0x4, fixed_abs, tag = 'smem constant byte address 0x4 - core index']
  #allocation1 [shape = 'u32[144,128]{1,0:T(1,128)}', space=vmem, size = 0x12000, scoped, tag = 'internal scratch']
  %s0 = inlined_call_operand.vmem [shape: f32[16,768], index: 0, kind: input, shape index: {}]
  %s1 = inlined_call_operand.hbm [shape: bf16[768,384], index: 1, kind: input, shape index: {}]
  %s2 = inlined_call_operand.hbm [shape: bf16[384,256], index: 2, kind: input, shape index: {}]
  %s3 = inlined_call_operand.vmem [shape: bf16[256,128], index: 3, kind: input, shape index: {}]
  %s4 = inlined_call_operand.hbm [shape: bf16[6,128,128], index: 4, kind: input, shape index: {}]
  %s5 = inlined_call_operand.vmem [shape: f32[9,384], index: 5, kind: input, shape index: {}]
  %s6 = inlined_call_operand.vmem [shape: f32[16,128], index: 6, kind: output, shape index: {}]
  %s7 = sld [smem:[#allocation0]]
  $region46: #{cd_net_forward.1} parent=0
    _
  %s9 = ssub.s32 1, %s7
  %s10 = scalar_select 0, %s9, %s7
  $region1: #{cd_net_forward.1} parent=0
    #allocation2 [shape = 'u8[589824]{0}', space=vmem, size = 0x90000, scoped, tag = 'input window, operand 1, single buffered']
    #allocation3 [shape = 's32[1]{0}', space=sflag, size = 0x4, scoped, tag = 'scoped memory for cd_net_forward.1']
    #allocation4 [shape = 'u8[196608]{0}', space=vmem, size = 0x30000, scoped, tag = 'input window, operand 2, single buffered']
    #allocation5 [shape = 's32[1]{0}', space=sflag, size = 0x4, scoped, tag = 'scoped memory for cd_net_forward.1']
    #allocation6 [shape = 'u8[196608]{0}', space=vmem, size = 0x30000, scoped, tag = 'input window, operand 4, single buffered']
    %11 = vsyncpa [#allocation3], 0
    %12 = vsyncpa [#allocation5], 0
    // Predicated region
    $region2: #{cd_net_forward.1} parent=1 // pred_check
      _
    $region3: #{cd_net_forward.1} parent=1 // pred_check_branch
      %14 = sbr.rel (0) target = $region5
    $region4: #{cd_net_forward.1} parent=1 // pred_region
      _
    $region5: #{cd_net_forward.1} parent=1 // pred_fallthru
      _
    // Predicated region
    $region6: #{cd_net_forward.1} parent=1 // pred_check
      _
    $region7: #{cd_net_forward.1} parent=1 // pred_check_branch
      %16 = sbr.rel (0) target = $region9
    $region8: #{cd_net_forward.1} parent=1 // pred_region
      %s18 = ssub.s32 18432, 18432
      %19 = vsyncadd [#allocation3], %s18
      %s20 = sshll.u32 [#allocation2], 4
      %s21 = int_to_ptr.vmem [resolvable:$true] %s20
      %26 = dma.hbm_to_vmem [thread:$0]  %s1, 18432, %s21, [#allocation3], 192, 192, 12
    $region9: #{cd_net_forward.1} parent=1 // pred_fallthru
      _
    // Predicated region
    $region10: #{cd_net_forward.1} parent=1 // pred_check
      _
    $region11: #{cd_net_forward.1} parent=1 // pred_check_branch
      %28 = sbr.rel (0) target = $region13
    $region12: #{cd_net_forward.1} parent=1 // pred_region
      %s30 = ssub.s32 6144, 6144
      %31 = vsyncadd [#allocation5], %s30
      %s32 = sshll.u32 [#allocation4], 4
      %s33 = int_to_ptr.vmem [resolvable:$true] %s32
      %38 = dma.hbm_to_vmem [thread:$0]  %s2, 6144, %s33, [#allocation5], 128, 128, 8
    $region13: #{cd_net_forward.1} parent=1 // pred_fallthru
      _
    // Predicated region
    $region14: #{cd_net_forward.1} parent=1 // pred_check
      _
    $region15: #{cd_net_forward.1} parent=1 // pred_check_branch
      %40 = sbr.rel (0) target = $region17
    $region16: #{cd_net_forward.1} parent=1 // pred_region
      _
    $region17: #{cd_net_forward.1} parent=1 // pred_fallthru
      _
    // Predicated region
    $region18: #{cd_net_forward.1} parent=1 // pred_check
      _
    $region19: #{cd_net_forward.1} parent=1 // pred_check_branch
      %42 = sbr.rel (0) target = $region21
    $region20: #{cd_net_forward.1} parent=1 // pred_region
      %s44 = ssub.s32 6144, 6144
      %45 = vsyncadd [#allocation5], %s44
      %s46 = sshll.u32 [#allocation6], 4
      %s47 = int_to_ptr.vmem [resolvable:$true] %s46
      %52 = dma.hbm_to_vmem [thread:$0]  %s4, 6144, %s47, [#allocation5], 64, 64, 4
    $region21: #{cd_net_forward.1} parent=1 // pred_fallthru
      _
    // Predicated region
    $region22: #{cd_net_forward.1} parent=1 // pred_check
      _
    $region23: #{cd_net_forward.1} parent=1 // pred_check_branch
      %54 = sbr.rel (0) target = $region25
    $region24: #{cd_net_forward.1} parent=1 // pred_region
      _
    $region25: #{cd_net_forward.1} parent=1 // pred_fallthru
      _
    // Predicated region
    $region26: #{cd_net_forward.1} parent=1 // pred_check
      _
    $region27: #{cd_net_forward.1} parent=1 // pred_check_branch
      %56 = sbr.rel (0) target = $region29
    $region28: #{cd_net_forward.1} parent=1 // pred_region
      %57 = dma.done [#allocation3], 18432
    $region29: #{cd_net_forward.1} parent=1 // pred_fallthru
      _
    // Predicated region
    $region30: #{cd_net_forward.1} parent=1 // pred_check
      _
    $region31: #{cd_net_forward.1} parent=1 // pred_check_branch
      %59 = sbr.rel (0) target = $region33
    $region32: #{cd_net_forward.1} parent=1 // pred_region
      %60 = dma.done [#allocation5], 6144
    $region33: #{cd_net_forward.1} parent=1 // pred_fallthru
      _
    // Predicated region
    $region34: #{cd_net_forward.1} parent=1 // pred_check
      _
    $region35: #{cd_net_forward.1} parent=1 // pred_check_branch
      %62 = sbr.rel (0) target = $region37
    $region36: #{cd_net_forward.1} parent=1 // pred_region
      %63 = dma.done [#allocation5], 6144
    $region37: #{cd_net_forward.1} parent=1 // pred_fallthru
      _
    %v65 = vld [vmem:[%s0] sm:$0xff]
    %v66 = vld [vmem:[%s0 + $0x8] sm:$0xff]
    %v67 = vld [vmem:[%s0 + $0x10] sm:$0xff]
    %v68 = vld [vmem:[%s0 + $0x18] sm:$0xff]
    %v69 = vld [vmem:[%s0 + $0x20] sm:$0xff]
    %v70 = vld [vmem:[%s0 + $0x28] sm:$0xff]
    %v71 = vld [vmem:[%s0 + $0x30] sm:$0xff]
    %v72 = vld [vmem:[%s0 + $0x38] sm:$0xff]
    %v73 = vld [vmem:[%s0 + $0x40] sm:$0xff]
    %v74 = vld [vmem:[%s0 + $0x48] sm:$0xff]
    %v75 = vld [vmem:[%s0 + $0x50] sm:$0xff]
    %v76 = vld [vmem:[%s0 + $0x58] sm:$0xff]
    %v77 = vld [vmem:[#allocation2] sm:$0xff]
    %v78 = vld [vmem:[#allocation2 + $0x8] sm:$0xf]
    %v79 = vld [vmem:[#allocation2 + $0xc] sm:$0xff]
    %v80 = vld [vmem:[#allocation2 + $0x14] sm:$0xf]
    %v81 = vld [vmem:[#allocation2 + $0x18] sm:$0xff]
    %v82 = vld [vmem:[#allocation2 + $0x20] sm:$0xf]
    %v83 = vld [vmem:[#allocation2 + $0x24] sm:$0xff]
    %v84 = vld [vmem:[#allocation2 + $0x2c] sm:$0xf]
    %v85 = vld [vmem:[#allocation2 + $0x30] sm:$0xff]
    %v86 = vld [vmem:[#allocation2 + $0x38] sm:$0xf]
    %v87 = vld [vmem:[#allocation2 + $0x3c] sm:$0xff]
    %v88 = vld [vmem:[#allocation2 + $0x44] sm:$0xf]
    %v89 = vld [vmem:[#allocation2 + $0x48] sm:$0xff]
    %v90 = vld [vmem:[#allocation2 + $0x50] sm:$0xf]
    %v91 = vld [vmem:[#allocation2 + $0x54] sm:$0xff]
    %v92 = vld [vmem:[#allocation2 + $0x5c] sm:$0xf]
    %v93 = vld [vmem:[#allocation2 + $0x60] sm:$0xff]
    %v94 = vld [vmem:[#allocation2 + $0x68] sm:$0xf]
    %v95 = vld [vmem:[#allocation2 + $0x6c] sm:$0xff]
    %v96 = vld [vmem:[#allocation2 + $0x74] sm:$0xf]
    %v97 = vld [vmem:[#allocation2 + $0x78] sm:$0xff]
    %v98 = vld [vmem:[#allocation2 + $0x80] sm:$0xf]
    %v99 = vld [vmem:[#allocation2 + $0x84] sm:$0xff]
    %v100 = vld [vmem:[#allocation2 + $0x8c] sm:$0xf]
    %v101 = vld [vmem:[#allocation2 + $0x90] sm:$0xff]
    %v102 = vld [vmem:[#allocation2 + $0x98] sm:$0xf]
    %v103 = vld [vmem:[#allocation2 + $0x9c] sm:$0xff]
    %v104 = vld [vmem:[#allocation2 + $0xa4] sm:$0xf]
    %v105 = vld [vmem:[#allocation2 + $0xa8] sm:$0xff]
    %v106 = vld [vmem:[#allocation2 + $0xb0] sm:$0xf]
    %v107 = vld [vmem:[#allocation2 + $0xb4] sm:$0xff]
    %v108 = vld [vmem:[#allocation2 + $0xbc] sm:$0xf]
    %v109 = vld [vmem:[#allocation2 + $0xc0] sm:$0xff]
    %v110 = vld [vmem:[#allocation2 + $0xc8] sm:$0xf]
    %v111 = vld [vmem:[#allocation2 + $0xcc] sm:$0xff]
    %v112 = vld [vmem:[#allocation2 + $0xd4] sm:$0xf]
    %v113 = vld [vmem:[#allocation2 + $0xd8] sm:$0xff]
    %v114 = vld [vmem:[#allocation2 + $0xe0] sm:$0xf]
    %v115 = vld [vmem:[#allocation2 + $0xe4] sm:$0xff]
    %v116 = vld [vmem:[#allocation2 + $0xec] sm:$0xf]
    %v117 = vld [vmem:[#allocation2 + $0xf0] sm:$0xff]
    %v118 = vld [vmem:[#allocation2 + $0xf8] sm:$0xf]
    %v119 = vld [vmem:[#allocation2 + $0xfc] sm:$0xff]
    %v120 = vld [vmem:[#allocation2 + $0x104] sm:$0xf]
    %v121 = vld [vmem:[#allocation2 + $0x108] sm:$0xff]
    %v122 = vld [vmem:[#allocation2 + $0x110] sm:$0xf]
    %v123 = vld [vmem:[#allocation2 + $0x114] sm:$0xff]
    %v124 = vld [vmem:[#allocation2 + $0x11c] sm:$0xf]
    %v125 = vld [vmem:[#allocation2 + $0x120] sm:$0xff]
    %v126 = vld [vmem:[#allocation2 + $0x128] sm:$0xf]
    %v127 = vld [vmem:[#allocation2 + $0x12c] sm:$0xff]
    %v128 = vld [vmem:[#allocation2 + $0x134] sm:$0xf]
    %v129 = vld [vmem:[#allocation2 + $0x138] sm:$0xff]
    %v130 = vld [vmem:[#allocation2 + $0x140] sm:$0xf]
    %v131 = vld [vmem:[#allocation2 + $0x144] sm:$0xff]
    %v132 = vld [vmem:[#allocation2 + $0x14c] sm:$0xf]
    %v133 = vld [vmem:[#allocation2 + $0x150] sm:$0xff]
    %v134 = vld [vmem:[#allocation2 + $0x158] sm:$0xf]
    %v135 = vld [vmem:[#allocation2 + $0x15c] sm:$0xff]
    %v136 = vld [vmem:[#allocation2 + $0x164] sm:$0xf]
    %v137 = vld [vmem:[#allocation2 + $0x168] sm:$0xff]
    %v138 = vld [vmem:[#allocation2 + $0x170] sm:$0xf]
    %v139 = vld [vmem:[#allocation2 + $0x174] sm:$0xff]
    %v140 = vld [vmem:[#allocation2 + $0x17c] sm:$0xf]
    %v141 = vld [vmem:[#allocation2 + $0x180] sm:$0xff]
    %v142 = vld [vmem:[#allocation2 + $0x188] sm:$0xf]
    %v143 = vld [vmem:[#allocation2 + $0x18c] sm:$0xff]
    %v144 = vld [vmem:[#allocation2 + $0x194] sm:$0xf]
    %v145 = vld [vmem:[#allocation2 + $0x198] sm:$0xff]
    %v146 = vld [vmem:[#allocation2 + $0x1a0] sm:$0xf]
    %v147 = vld [vmem:[#allocation2 + $0x1a4] sm:$0xff]
    %v148 = vld [vmem:[#allocation2 + $0x1ac] sm:$0xf]
    %v149 = vld [vmem:[#allocation2 + $0x1b0] sm:$0xff]
    %v150 = vld [vmem:[#allocation2 + $0x1b8] sm:$0xf]
    %v151 = vld [vmem:[#allocation2 + $0x1bc] sm:$0xff]
    %v152 = vld [vmem:[#allocation2 + $0x1c4] sm:$0xf]
    %v153 = vld [vmem:[#allocation2 + $0x1c8] sm:$0xff]
    %v154 = vld [vmem:[#allocation2 + $0x1d0] sm:$0xf]
    %v155 = vld [vmem:[#allocation2 + $0x1d4] sm:$0xff]
    %v156 = vld [vmem:[#allocation2 + $0x1dc] sm:$0xf]
    %v157 = vld [vmem:[#allocation2 + $0x1e0] sm:$0xff]
    %v158 = vld [vmem:[#allocation2 + $0x1e8] sm:$0xf]
    %v159 = vld [vmem:[#allocation2 + $0x1ec] sm:$0xff]
    %v160 = vld [vmem:[#allocation2 + $0x1f4] sm:$0xf]
    %v161 = vld [vmem:[#allocation2 + $0x1f8] sm:$0xff]
    %v162 = vld [vmem:[#allocation2 + $0x200] sm:$0xf]
    %v163 = vld [vmem:[#allocation2 + $0x204] sm:$0xff]
    %v164 = vld [vmem:[#allocation2 + $0x20c] sm:$0xf]
    %v165 = vld [vmem:[#allocation2 + $0x210] sm:$0xff]
    %v166 = vld [vmem:[#allocation2 + $0x218] sm:$0xf]
    %v167 = vld [vmem:[#allocation2 + $0x21c] sm:$0xff]
    %v168 = vld [vmem:[#allocation2 + $0x224] sm:$0xf]
    %v169 = vld [vmem:[#allocation2 + $0x228] sm:$0xff]
    %v170 = vld [vmem:[#allocation2 + $0x230] sm:$0xf]
    %v171 = vld [vmem:[#allocation2 + $0x234] sm:$0xff]
    %v172 = vld [vmem:[#allocation2 + $0x23c] sm:$0xf]
    %v173 = vld [vmem:[#allocation2 + $0x240] sm:$0xff]
    %v174 = vld [vmem:[#allocation2 + $0x248] sm:$0xf]
    %v175 = vld [vmem:[#allocation2 + $0x24c] sm:$0xff]
    %v176 = vld [vmem:[#allocation2 + $0x254] sm:$0xf]
    %v177 = vld [vmem:[#allocation2 + $0x258] sm:$0xff]
    %v178 = vld [vmem:[#allocation2 + $0x260] sm:$0xf]
    %v179 = vld [vmem:[#allocation2 + $0x264] sm:$0xff]
    %v180 = vld [vmem:[#allocation2 + $0x26c] sm:$0xf]
    %v181 = vld [vmem:[#allocation2 + $0x270] sm:$0xff]
    %v182 = vld [vmem:[#allocation2 + $0x278] sm:$0xf]
    %v183 = vld [vmem:[#allocation2 + $0x27c] sm:$0xff]
    %v184 = vld [vmem:[#allocation2 + $0x284] sm:$0xf]
    %v185 = vld [vmem:[#allocation2 + $0x288] sm:$0xff]
    %v186 = vld [vmem:[#allocation2 + $0x290] sm:$0xf]
    %v187 = vld [vmem:[#allocation2 + $0x294] sm:$0xff]
    %v188 = vld [vmem:[#allocation2 + $0x29c] sm:$0xf]
    %v189 = vld [vmem:[#allocation2 + $0x2a0] sm:$0xff]
    %v190 = vld [vmem:[#allocation2 + $0x2a8] sm:$0xf]
    %v191 = vld [vmem:[#allocation2 + $0x2ac] sm:$0xff]
    %v192 = vld [vmem:[#allocation2 + $0x2b4] sm:$0xf]
    %v193 = vld [vmem:[#allocation2 + $0x2b8] sm:$0xff]
    %v194 = vld [vmem:[#allocation2 + $0x2c0] sm:$0xf]
    %v195 = vld [vmem:[#allocation2 + $0x2c4] sm:$0xff]
    %v196 = vld [vmem:[#allocation2 + $0x2cc] sm:$0xf]
    %v197 = vld [vmem:[#allocation2 + $0x2d0] sm:$0xff]
    %v198 = vld [vmem:[#allocation2 + $0x2d8] sm:$0xf]
    %v199 = vld [vmem:[#allocation2 + $0x2dc] sm:$0xff]
    %v200 = vld [vmem:[#allocation2 + $0x2e4] sm:$0xf]
    %v201 = vld [vmem:[#allocation2 + $0x2e8] sm:$0xff]
    %v202 = vld [vmem:[#allocation2 + $0x2f0] sm:$0xf]
    %v203 = vld [vmem:[#allocation2 + $0x2f4] sm:$0xff]
    %v204 = vld [vmem:[#allocation2 + $0x2fc] sm:$0xf]
    %v205 = vld [vmem:[#allocation2 + $0x300] sm:$0xff]
    %v206 = vld [vmem:[#allocation2 + $0x308] sm:$0xf]
    %v207 = vld [vmem:[#allocation2 + $0x30c] sm:$0xff]
    %v208 = vld [vmem:[#allocation2 + $0x314] sm:$0xf]
    %v209 = vld [vmem:[#allocation2 + $0x318] sm:$0xff]
    %v210 = vld [vmem:[#allocation2 + $0x320] sm:$0xf]
    %v211 = vld [vmem:[#allocation2 + $0x324] sm:$0xff]
    %v212 = vld [vmem:[#allocation2 + $0x32c] sm:$0xf]
    %v213 = vld [vmem:[#allocation2 + $0x330] sm:$0xff]
    %v214 = vld [vmem:[#allocation2 + $0x338] sm:$0xf]
    %v215 = vld [vmem:[#allocation2 + $0x33c] sm:$0xff]
    %v216 = vld [vmem:[#allocation2 + $0x344] sm:$0xf]
    %v217 = vld [vmem:[#allocation2 + $0x348] sm:$0xff]
    %v218 = vld [vmem:[#allocation2 + $0x350] sm:$0xf]
    %v219 = vld [vmem:[#allocation2 + $0x354] sm:$0xff]
    %v220 = vld [vmem:[#allocation2 + $0x35c] sm:$0xf]
    %v221 = vld [vmem:[#allocation2 + $0x360] sm:$0xff]
    %v222 = vld [vmem:[#allocation2 + $0x368] sm:$0xf]
    %v223 = vld [vmem:[#allocation2 + $0x36c] sm:$0xff]
    %v224 = vld [vmem:[#allocation2 + $0x374] sm:$0xf]
    %v225 = vld [vmem:[#allocation2 + $0x378] sm:$0xff]
    %v226 = vld [vmem:[#allocation2 + $0x380] sm:$0xf]
    %v227 = vld [vmem:[#allocation2 + $0x384] sm:$0xff]
    %v228 = vld [vmem:[#allocation2 + $0x38c] sm:$0xf]
    %v229 = vld [vmem:[#allocation2 + $0x390] sm:$0xff]
    %v230 = vld [vmem:[#allocation2 + $0x398] sm:$0xf]
    %v231 = vld [vmem:[#allocation2 + $0x39c] sm:$0xff]
    %v232 = vld [vmem:[#allocation2 + $0x3a4] sm:$0xf]
    %v233 = vld [vmem:[#allocation2 + $0x3a8] sm:$0xff]
    %v234 = vld [vmem:[#allocation2 + $0x3b0] sm:$0xf]
    %v235 = vld [vmem:[#allocation2 + $0x3b4] sm:$0xff]
    %v236 = vld [vmem:[#allocation2 + $0x3bc] sm:$0xf]
    %v237 = vld [vmem:[#allocation2 + $0x3c0] sm:$0xff]
    %v238 = vld [vmem:[#allocation2 + $0x3c8] sm:$0xf]
    %v239 = vld [vmem:[#allocation2 + $0x3cc] sm:$0xff]
    %v240 = vld [vmem:[#allocation2 + $0x3d4] sm:$0xf]
    %v241 = vld [vmem:[#allocation2 + $0x3d8] sm:$0xff]
    %v242 = vld [vmem:[#allocation2 + $0x3e0] sm:$0xf]
    %v243 = vld [vmem:[#allocation2 + $0x3e4] sm:$0xff]
    %v244 = vld [vmem:[#allocation2 + $0x3ec] sm:$0xf]
    %v245 = vld [vmem:[#allocation2 + $0x3f0] sm:$0xff]
    %v246 = vld [vmem:[#allocation2 + $0x3f8] sm:$0xf]
    %v247 = vld [vmem:[#allocation2 + $0x3fc] sm:$0xff]
    %v248 = vld [vmem:[#allocation2 + $0x404] sm:$0xf]
    %v249 = vld [vmem:[#allocation2 + $0x408] sm:$0xff]
    %v250 = vld [vmem:[#allocation2 + $0x410] sm:$0xf]
    %v251 = vld [vmem:[#allocation2 + $0x414] sm:$0xff]
    %v252 = vld [vmem:[#allocation2 + $0x41c] sm:$0xf]
    %v253 = vld [vmem:[#allocation2 + $0x420] sm:$0xff]
    %v254 = vld [vmem:[#allocation2 + $0x428] sm:$0xf]
    %v255 = vld [vmem:[#allocation2 + $0x42c] sm:$0xff]
    %v256 = vld [vmem:[#allocation2 + $0x434] sm:$0xf]
    %v257 = vld [vmem:[#allocation2 + $0x438] sm:$0xff]
    %v258 = vld [vmem:[#allocation2 + $0x440] sm:$0xf]
    %v259 = vld [vmem:[#allocation2 + $0x444] sm:$0xff]
    %v260 = vld [vmem:[#allocation2 + $0x44c] sm:$0xf]
    %v261 = vld [vmem:[#allocation2 + $0x450] sm:$0xff]
    %v262 = vld [vmem:[#allocation2 + $0x458] sm:$0xf]
    %v263 = vld [vmem:[#allocation2 + $0x45c] sm:$0xff]
    %v264 = vld [vmem:[#allocation2 + $0x464] sm:$0xf]
    %v265 = vld [vmem:[#allocation2 + $0x468] sm:$0xff]
    %v266 = vld [vmem:[#allocation2 + $0x470] sm:$0xf]
    %v267 = vld [vmem:[#allocation2 + $0x474] sm:$0xff]
    %v268 = vld [vmem:[#allocation2 + $0x47c] sm:$0xf]
    %v269 = vld [vmem:[%s5] ss:$8 sm:$0x7]
    %v270 = vpack.c.bf16 %v71, %v65
    %v271 = vpack.c.bf16 %v72, %v66
    %v272 = vpack.c.bf16 %v73, %v67
    %v273 = vpack.c.bf16 %v74, %v68
    %v274 = vpack.c.bf16 %v75, %v69
    %v275 = vpack.c.bf16 %v76, %v70
    %v277 = vlaneseq
    %v278 = vshrl.u32 %v277, 7
    %v279 = vsub.s32 0, %v278
    %v280 = vrot.slane %v269, %v279
    %v281 = vlaneseq
    %v282 = vshrl.u32 %v281, 7
    %v283 = vsub.s32 1, %v282
    %v284 = vrot.slane %v269, %v283
    %v285 = vlaneseq
    %v286 = vshrl.u32 %v285, 7
    %v287 = vsub.s32 2, %v286
    %v288 = vrot.slane %v269, %v287
    %v484 = vunpack.c.l.b16 %v77
    %v485 = vunpack.c.h.b16 %v77
    %v486 = vunpack.c.l.b16 %v78
    %v487 = vunpack.c.l.b16 %v79
    %v488 = vunpack.c.h.b16 %v79
    %v489 = vunpack.c.l.b16 %v80
    %v490 = vunpack.c.l.b16 %v81
    %v491 = vunpack.c.h.b16 %v81
    %v492 = vunpack.c.l.b16 %v82
    %v493 = vunpack.c.l.b16 %v83
    %v494 = vunpack.c.h.b16 %v83
    %v495 = vunpack.c.l.b16 %v84
    %v496 = vunpack.c.l.b16 %v85
    %v497 = vunpack.c.h.b16 %v85
    %v498 = vunpack.c.l.b16 %v86
    %v499 = vunpack.c.l.b16 %v87
    %v500 = vunpack.c.h.b16 %v87
    %v501 = vunpack.c.l.b16 %v88
    %v502 = vunpack.c.l.b16 %v89
    %v503 = vunpack.c.h.b16 %v89
    %v504 = vunpack.c.l.b16 %v90
    %v505 = vunpack.c.l.b16 %v91
    %v506 = vunpack.c.h.b16 %v91
    %v507 = vunpack.c.l.b16 %v92
    %v508 = vunpack.c.l.b16 %v93
    %v509 = vunpack.c.h.b16 %v93
    %v510 = vunpack.c.l.b16 %v94
    %v511 = vunpack.c.l.b16 %v95
    %v512 = vunpack.c.h.b16 %v95
    %v513 = vunpack.c.l.b16 %v96
    %v514 = vunpack.c.l.b16 %v97
    %v515 = vunpack.c.h.b16 %v97
    %v516 = vunpack.c.l.b16 %v98
    %v517 = vunpack.c.l.b16 %v99
    %v518 = vunpack.c.h.b16 %v99
    %v519 = vunpack.c.l.b16 %v100
    %v520 = vunpack.c.l.b16 %v101
    %v521 = vunpack.c.h.b16 %v101
    %v522 = vunpack.c.l.b16 %v102
    %v523 = vunpack.c.l.b16 %v103
    %v524 = vunpack.c.h.b16 %v103
    %v525 = vunpack.c.l.b16 %v104
    %v526 = vunpack.c.l.b16 %v105
    %v527 = vunpack.c.h.b16 %v105
    %v528 = vunpack.c.l.b16 %v106
    %v529 = vunpack.c.l.b16 %v107
    %v530 = vunpack.c.h.b16 %v107
    %v531 = vunpack.c.l.b16 %v108
    %v532 = vunpack.c.l.b16 %v109
    %v533 = vunpack.c.h.b16 %v109
    %v534 = vunpack.c.l.b16 %v110
    %v535 = vunpack.c.l.b16 %v111
    %v536 = vunpack.c.h.b16 %v111
    %v537 = vunpack.c.l.b16 %v112
    %v538 = vunpack.c.l.b16 %v113
    %v539 = vunpack.c.h.b16 %v113
    %v540 = vunpack.c.l.b16 %v114
    %v541 = vunpack.c.l.b16 %v115
    %v542 = vunpack.c.h.b16 %v115
    %v543 = vunpack.c.l.b16 %v116
    %v544 = vunpack.c.l.b16 %v117
    %v545 = vunpack.c.h.b16 %v117
    %v546 = vunpack.c.l.b16 %v118
    %v547 = vunpack.c.l.b16 %v119
    %v548 = vunpack.c.h.b16 %v119
    %v549 = vunpack.c.l.b16 %v120
    %v550 = vunpack.c.l.b16 %v121
    %v551 = vunpack.c.h.b16 %v121
    %v552 = vunpack.c.l.b16 %v122
    %v553 = vunpack.c.l.b16 %v123
    %v554 = vunpack.c.h.b16 %v123
    %v555 = vunpack.c.l.b16 %v124
    %v556 = vunpack.c.l.b16 %v125
    %v557 = vunpack.c.h.b16 %v125
    %v558 = vunpack.c.l.b16 %v126
    %v559 = vunpack.c.l.b16 %v127
    %v560 = vunpack.c.h.b16 %v127
    %v561 = vunpack.c.l.b16 %v128
    %v562 = vunpack.c.l.b16 %v129
    %v563 = vunpack.c.h.b16 %v129
    %v564 = vunpack.c.l.b16 %v130
    %v565 = vunpack.c.l.b16 %v131
    %v566 = vunpack.c.h.b16 %v131
    %v567 = vunpack.c.l.b16 %v132
    %v568 = vunpack.c.l.b16 %v133
    %v569 = vunpack.c.h.b16 %v133
    %v570 = vunpack.c.l.b16 %v134
    %v571 = vunpack.c.l.b16 %v135
    %v572 = vunpack.c.h.b16 %v135
    %v573 = vunpack.c.l.b16 %v136
    %v574 = vunpack.c.l.b16 %v137
    %v575 = vunpack.c.h.b16 %v137
    %v576 = vunpack.c.l.b16 %v138
    %v577 = vunpack.c.l.b16 %v139
    %v578 = vunpack.c.h.b16 %v139
    %v579 = vunpack.c.l.b16 %v140
    %v580 = vunpack.c.l.b16 %v141
    %v581 = vunpack.c.h.b16 %v141
    %v582 = vunpack.c.l.b16 %v142
    %v583 = vunpack.c.l.b16 %v143
    %v584 = vunpack.c.h.b16 %v143
    %v585 = vunpack.c.l.b16 %v144
    %v586 = vunpack.c.l.b16 %v145
    %v587 = vunpack.c.h.b16 %v145
    %v588 = vunpack.c.l.b16 %v146
    %v589 = vunpack.c.l.b16 %v147
    %v590 = vunpack.c.h.b16 %v147
    %v591 = vunpack.c.l.b16 %v148
    %v592 = vunpack.c.l.b16 %v149
    %v593 = vunpack.c.h.b16 %v149
    %v594 = vunpack.c.l.b16 %v150
    %v595 = vunpack.c.l.b16 %v151
    %v596 = vunpack.c.h.b16 %v151
    %v597 = vunpack.c.l.b16 %v152
    %v598 = vunpack.c.l.b16 %v153
    %v599 = vunpack.c.h.b16 %v153
    %v600 = vunpack.c.l.b16 %v154
    %v601 = vunpack.c.l.b16 %v155
    %v602 = vunpack.c.h.b16 %v155
    %v603 = vunpack.c.l.b16 %v156
    %v604 = vunpack.c.l.b16 %v157
    %v605 = vunpack.c.h.b16 %v157
    %v606 = vunpack.c.l.b16 %v158
    %v607 = vunpack.c.l.b16 %v159
    %v608 = vunpack.c.h.b16 %v159
    %v609 = vunpack.c.l.b16 %v160
    %v610 = vunpack.c.l.b16 %v161
    %v611 = vunpack.c.h.b16 %v161
    %v612 = vunpack.c.l.b16 %v162
    %v613 = vunpack.c.l.b16 %v163
    %v614 = vunpack.c.h.b16 %v163
    %v615 = vunpack.c.l.b16 %v164
    %v616 = vunpack.c.l.b16 %v165
    %v617 = vunpack.c.h.b16 %v165
    %v618 = vunpack.c.l.b16 %v166
    %v619 = vunpack.c.l.b16 %v167
    %v620 = vunpack.c.h.b16 %v167
    %v621 = vunpack.c.l.b16 %v168
    %v622 = vunpack.c.l.b16 %v169
    %v623 = vunpack.c.h.b16 %v169
    %v624 = vunpack.c.l.b16 %v170
    %v625 = vunpack.c.l.b16 %v171
    %v626 = vunpack.c.h.b16 %v171
    %v627 = vunpack.c.l.b16 %v172
    %v628 = vunpack.c.l.b16 %v173
    %v629 = vunpack.c.h.b16 %v173
    %v630 = vunpack.c.l.b16 %v174
    %v631 = vunpack.c.l.b16 %v175
    %v632 = vunpack.c.h.b16 %v175
    %v633 = vunpack.c.l.b16 %v176
    %v634 = vunpack.c.l.b16 %v177
    %v635 = vunpack.c.h.b16 %v177
    %v636 = vunpack.c.l.b16 %v178
    %v637 = vunpack.c.l.b16 %v179
    %v638 = vunpack.c.h.b16 %v179
    %v639 = vunpack.c.l.b16 %v180
    %v640 = vunpack.c.l.b16 %v181
    %v641 = vunpack.c.h.b16 %v181
    %v642 = vunpack.c.l.b16 %v182
    %v643 = vunpack.c.l.b16 %v183
    %v644 = vunpack.c.h.b16 %v183
    %v645 = vunpack.c.l.b16 %v184
    %v646 = vunpack.c.l.b16 %v185
    %v647 = vunpack.c.h.b16 %v185
    %v648 = vunpack.c.l.b16 %v186
    %v649 = vunpack.c.l.b16 %v187
    %v650 = vunpack.c.h.b16 %v187
    %v651 = vunpack.c.l.b16 %v188
    %v652 = vunpack.c.l.b16 %v189
    %v653 = vunpack.c.h.b16 %v189
    %v654 = vunpack.c.l.b16 %v190
    %v655 = vunpack.c.l.b16 %v191
    %v656 = vunpack.c.h.b16 %v191
    %v657 = vunpack.c.l.b16 %v192
    %v658 = vunpack.c.l.b16 %v193
    %v659 = vunpack.c.h.b16 %v193
    %v660 = vunpack.c.l.b16 %v194
    %v661 = vunpack.c.l.b16 %v195
    %v662 = vunpack.c.h.b16 %v195
    %v663 = vunpack.c.l.b16 %v196
    %v664 = vunpack.c.l.b16 %v197
    %v665 = vunpack.c.h.b16 %v197
    %v666 = vunpack.c.l.b16 %v198
    %v667 = vunpack.c.l.b16 %v199
    %v668 = vunpack.c.h.b16 %v199
    %v669 = vunpack.c.l.b16 %v200
    %v670 = vunpack.c.l.b16 %v201
    %v671 = vunpack.c.h.b16 %v201
    %v672 = vunpack.c.l.b16 %v202
    %v673 = vunpack.c.l.b16 %v203
    %v674 = vunpack.c.h.b16 %v203
    %v675 = vunpack.c.l.b16 %v204
    %v676 = vunpack.c.l.b16 %v205
    %v677 = vunpack.c.h.b16 %v205
    %v678 = vunpack.c.l.b16 %v206
    %v679 = vunpack.c.l.b16 %v207
    %v680 = vunpack.c.h.b16 %v207
    %v681 = vunpack.c.l.b16 %v208
    %v682 = vunpack.c.l.b16 %v209
    %v683 = vunpack.c.h.b16 %v209
    %v684 = vunpack.c.l.b16 %v210
    %v685 = vunpack.c.l.b16 %v211
    %v686 = vunpack.c.h.b16 %v211
    %v687 = vunpack.c.l.b16 %v212
    %v688 = vunpack.c.l.b16 %v213
    %v689 = vunpack.c.h.b16 %v213
    %v690 = vunpack.c.l.b16 %v214
    %v691 = vunpack.c.l.b16 %v215
    %v692 = vunpack.c.h.b16 %v215
    %v693 = vunpack.c.l.b16 %v216
    %v694 = vunpack.c.l.b16 %v217
    %v695 = vunpack.c.h.b16 %v217
    %v696 = vunpack.c.l.b16 %v218
    %v697 = vunpack.c.l.b16 %v219
    %v698 = vunpack.c.h.b16 %v219
    %v699 = vunpack.c.l.b16 %v220
    %v700 = vunpack.c.l.b16 %v221
    %v701 = vunpack.c.h.b16 %v221
    %v702 = vunpack.c.l.b16 %v222
    %v703 = vunpack.c.l.b16 %v223
    %v704 = vunpack.c.h.b16 %v223
    %v705 = vunpack.c.l.b16 %v224
    %v706 = vunpack.c.l.b16 %v225
    %v707 = vunpack.c.h.b16 %v225
    %v708 = vunpack.c.l.b16 %v226
    %v709 = vunpack.c.l.b16 %v227
    %v710 = vunpack.c.h.b16 %v227
    %v711 = vunpack.c.l.b16 %v228
    %v712 = vunpack.c.l.b16 %v229
    %v713 = vunpack.c.h.b16 %v229
    %v714 = vunpack.c.l.b16 %v230
    %v715 = vunpack.c.l.b16 %v231
    %v716 = vunpack.c.h.b16 %v231
    %v717 = vunpack.c.l.b16 %v232
    %v718 = vunpack.c.l.b16 %v233
    %v719 = vunpack.c.h.b16 %v233
    %v720 = vunpack.c.l.b16 %v234
    %v721 = vunpack.c.l.b16 %v235
    %v722 = vunpack.c.h.b16 %v235
    %v723 = vunpack.c.l.b16 %v236
    %v724 = vunpack.c.l.b16 %v237
    %v725 = vunpack.c.h.b16 %v237
    %v726 = vunpack.c.l.b16 %v238
    %v727 = vunpack.c.l.b16 %v239
    %v728 = vunpack.c.h.b16 %v239
    %v729 = vunpack.c.l.b16 %v240
    %v730 = vunpack.c.l.b16 %v241
    %v731 = vunpack.c.h.b16 %v241
    %v732 = vunpack.c.l.b16 %v242
    %v733 = vunpack.c.l.b16 %v243
    %v734 = vunpack.c.h.b16 %v243
    %v735 = vunpack.c.l.b16 %v244
    %v736 = vunpack.c.l.b16 %v245
    %v737 = vunpack.c.h.b16 %v245
    %v738 = vunpack.c.l.b16 %v246
    %v739 = vunpack.c.l.b16 %v247
    %v740 = vunpack.c.h.b16 %v247
    %v741 = vunpack.c.l.b16 %v248
    %v742 = vunpack.c.l.b16 %v249
    %v743 = vunpack.c.h.b16 %v249
    %v744 = vunpack.c.l.b16 %v250
    %v745 = vunpack.c.l.b16 %v251
    %v746 = vunpack.c.h.b16 %v251
    %v747 = vunpack.c.l.b16 %v252
    %v748 = vunpack.c.l.b16 %v253
    %v749 = vunpack.c.h.b16 %v253
    %v750 = vunpack.c.l.b16 %v254
    %v751 = vunpack.c.l.b16 %v255
    %v752 = vunpack.c.h.b16 %v255
    %v753 = vunpack.c.l.b16 %v256
    %v754 = vunpack.c.l.b16 %v257
    %v755 = vunpack.c.h.b16 %v257
    %v756 = vunpack.c.l.b16 %v258
    %v757 = vunpack.c.l.b16 %v259
    %v758 = vunpack.c.h.b16 %v259
    %v759 = vunpack.c.l.b16 %v260
    %v760 = vunpack.c.l.b16 %v261
    %v761 = vunpack.c.h.b16 %v261
    %v762 = vunpack.c.l.b16 %v262
    %v763 = vunpack.c.l.b16 %v263
    %v764 = vunpack.c.h.b16 %v263
    %v765 = vunpack.c.l.b16 %v264
    %v766 = vunpack.c.l.b16 %v265
    %v767 = vunpack.c.h.b16 %v265
    %v768 = vunpack.c.l.b16 %v266
    %v769 = vunpack.c.l.b16 %v267
    %v770 = vunpack.c.h.b16 %v267
    %v771 = vunpack.c.l.b16 %v268
    %v772 = vpack.c.b16 %v487, %v484
    %v773 = vpack.c.b16 %v488, %v485
    %v774 = vpack.c.b16 %v489, %v486
    %v775 = vpack.c.b16 %v493, %v490
    %v776 = vpack.c.b16 %v494, %v491
    %v777 = vpack.c.b16 %v495, %v492
    %v778 = vpack.c.b16 %v499, %v496
    %v779 = vpack.c.b16 %v500, %v497
    %v780 = vpack.c.b16 %v501, %v498
    %v781 = vpack.c.b16 %v505, %v502
    %v782 = vpack.c.b16 %v506, %v503
    %v783 = vpack.c.b16 %v507, %v504
    %v784 = vpack.c.b16 %v511, %v508
    %v785 = vpack.c.b16 %v512, %v509
    %v786 = vpack.c.b16 %v513, %v510
    %v787 = vpack.c.b16 %v517, %v514
    %v788 = vpack.c.b16 %v518, %v515
    %v789 = vpack.c.b16 %v519, %v516
    %v790 = vpack.c.b16 %v523, %v520
    %v791 = vpack.c.b16 %v524, %v521
    %v792 = vpack.c.b16 %v525, %v522
    %v793 = vpack.c.b16 %v529, %v526
    %v794 = vpack.c.b16 %v530, %v527
    %v795 = vpack.c.b16 %v531, %v528
    %v796 = vpack.c.b16 %v535, %v532
    %v797 = vpack.c.b16 %v536, %v533
    %v798 = vpack.c.b16 %v537, %v534
    %v799 = vpack.c.b16 %v541, %v538
    %v800 = vpack.c.b16 %v542, %v539
    %v801 = vpack.c.b16 %v543, %v540
    %v802 = vpack.c.b16 %v547, %v544
    %v803 = vpack.c.b16 %v548, %v545
    %v804 = vpack.c.b16 %v549, %v546
    %v805 = vpack.c.b16 %v553, %v550
    %v806 = vpack.c.b16 %v554, %v551
    %v807 = vpack.c.b16 %v555, %v552
    %v808 = vpack.c.b16 %v559, %v556
    %v809 = vpack.c.b16 %v560, %v557
    %v810 = vpack.c.b16 %v561, %v558
    %v811 = vpack.c.b16 %v565, %v562
    %v812 = vpack.c.b16 %v566, %v563
    %v813 = vpack.c.b16 %v567, %v564
    %v814 = vpack.c.b16 %v571, %v568
    %v815 = vpack.c.b16 %v572, %v569
    %v816 = vpack.c.b16 %v573, %v570
    %v817 = vpack.c.b16 %v577, %v574
    %v818 = vpack.c.b16 %v578, %v575
    %v819 = vpack.c.b16 %v579, %v576
    %v820 = vpack.c.b16 %v583, %v580
    %v821 = vpack.c.b16 %v584, %v581
    %v822 = vpack.c.b16 %v585, %v582
    %v823 = vpack.c.b16 %v589, %v586
    %v824 = vpack.c.b16 %v590, %v587
    %v825 = vpack.c.b16 %v591, %v588
    %v826 = vpack.c.b16 %v595, %v592
    %v827 = vpack.c.b16 %v596, %v593
    %v828 = vpack.c.b16 %v597, %v594
    %v829 = vpack.c.b16 %v601, %v598
    %v830 = vpack.c.b16 %v602, %v599
    %v831 = vpack.c.b16 %v603, %v600
    %v832 = vpack.c.b16 %v607, %v604
    %v833 = vpack.c.b16 %v608, %v605
    %v834 = vpack.c.b16 %v609, %v606
    %v835 = vpack.c.b16 %v613, %v610
    %v836 = vpack.c.b16 %v614, %v611
    %v837 = vpack.c.b16 %v615, %v612
    %v838 = vpack.c.b16 %v619, %v616
    %v839 = vpack.c.b16 %v620, %v617
    %v840 = vpack.c.b16 %v621, %v618
    %v841 = vpack.c.b16 %v625, %v622
    %v842 = vpack.c.b16 %v626, %v623
    %v843 = vpack.c.b16 %v627, %v624
    %v844 = vpack.c.b16 %v631, %v628
    %v845 = vpack.c.b16 %v632, %v629
    %v846 = vpack.c.b16 %v633, %v630
    %v847 = vpack.c.b16 %v637, %v634
    %v848 = vpack.c.b16 %v638, %v635
    %v849 = vpack.c.b16 %v639, %v636
    %v850 = vpack.c.b16 %v643, %v640
    %v851 = vpack.c.b16 %v644, %v641
    %v852 = vpack.c.b16 %v645, %v642
    %v853 = vpack.c.b16 %v649, %v646
    %v854 = vpack.c.b16 %v650, %v647
    %v855 = vpack.c.b16 %v651, %v648
    %v856 = vpack.c.b16 %v655, %v652
    %v857 = vpack.c.b16 %v656, %v653
    %v858 = vpack.c.b16 %v657, %v654
    %v859 = vpack.c.b16 %v661, %v658
    %v860 = vpack.c.b16 %v662, %v659
    %v861 = vpack.c.b16 %v663, %v660
    %v862 = vpack.c.b16 %v667, %v664
    %v863 = vpack.c.b16 %v668, %v665
    %v864 = vpack.c.b16 %v669, %v666
    %v865 = vpack.c.b16 %v673, %v670
    %v866 = vpack.c.b16 %v674, %v671
    %v867 = vpack.c.b16 %v675, %v672
    %v868 = vpack.c.b16 %v679, %v676
    %v869 = vpack.c.b16 %v680, %v677
    %v870 = vpack.c.b16 %v681, %v678
    %v871 = vpack.c.b16 %v685, %v682
    %v872 = vpack.c.b16 %v686, %v683
    %v873 = vpack.c.b16 %v687, %v684
    %v874 = vpack.c.b16 %v691, %v688
    %v875 = vpack.c.b16 %v692, %v689
    %v876 = vpack.c.b16 %v693, %v690
    %v877 = vpack.c.b16 %v697, %v694
    %v878 = vpack.c.b16 %v698, %v695
    %v879 = vpack.c.b16 %v699, %v696
    %v880 = vpack.c.b16 %v703, %v700
    %v881 = vpack.c.b16 %v704, %v701
    %v882 = vpack.c.b16 %v705, %v702
    %v883 = vpack.c.b16 %v709, %v706
    %v884 = vpack.c.b16 %v710, %v707
    %v885 = vpack.c.b16 %v711, %v708
    %v886 = vpack.c.b16 %v715, %v712
    %v887 = vpack.c.b16 %v716, %v713
    %v888 = vpack.c.b16 %v717, %v714
    %v889 = vpack.c.b16 %v721, %v718
    %v890 = vpack.c.b16 %v722, %v719
    %v891 = vpack.c.b16 %v723, %v720
    %v892 = vpack.c.b16 %v727, %v724
    %v893 = vpack.c.b16 %v728, %v725
    %v894 = vpack.c.b16 %v729, %v726
    %v895 = vpack.c.b16 %v733, %v730
    %v896 = vpack.c.b16 %v734, %v731
    %v897 = vpack.c.b16 %v735, %v732
    %v898 = vpack.c.b16 %v739, %v736
    %v899 = vpack.c.b16 %v740, %v737
    %v900 = vpack.c.b16 %v741, %v738
    %v901 = vpack.c.b16 %v745, %v742
    %v902 = vpack.c.b16 %v746, %v743
    %v903 = vpack.c.b16 %v747, %v744
    %v904 = vpack.c.b16 %v751, %v748
    %v905 = vpack.c.b16 %v752, %v749
    %v906 = vpack.c.b16 %v753, %v750
    %v907 = vpack.c.b16 %v757, %v754
    %v908 = vpack.c.b16 %v758, %v755
    %v909 = vpack.c.b16 %v759, %v756
    %v910 = vpack.c.b16 %v763, %v760
    %v911 = vpack.c.b16 %v764, %v761
    %v912 = vpack.c.b16 %v765, %v762
    %v913 = vpack.c.b16 %v769, %v766
    %v914 = vpack.c.b16 %v770, %v767
    %v915 = vpack.c.b16 %v771, %v768
    %1060 = vmatprep.subr.bf16.mxu0 %v773
    %1061 = vmatpush1.bf16.msra.mxu0 %v772
    %1062 = vmatprep.subr.bf16.mxu0 %v776
    %1063 = vmatpush1.bf16.msra.mxu0 %v775
    %1064 = vmatprep.subr.bf16.mxu0 %v779
    %1065 = vmatpush1.bf16.msra.mxu0 %v778
    %1066 = vmatprep.subr.bf16.mxu0 %v782
    %1067 = vmatpush1.bf16.msra.mxu0 %v781
    %1068 = vmatprep.subr.bf16.mxu0 %v785
    %1069 = vmatpush1.bf16.msra.mxu0 %v784
    %1070 = vmatprep.subr.bf16.mxu0 %v788
    %1071 = vmatpush1.bf16.msra.mxu0 %v787
    %1072 = vmatprep.subr.bf16.mxu0 %v791
    %1073 = vmatpush1.bf16.msra.mxu0 %v790
    %1074 = vmatprep.subr.bf16.mxu0 %v794
    %1075 = vmatpush1.bf16.msra.mxu0 %v793
    %1076 = vmatprep.subr.bf16.mxu0 %v797
    %1077 = vmatpush1.bf16.msra.mxu0 %v796
    %1078 = vmatprep.subr.bf16.mxu0 %v800
    %1079 = vmatpush1.bf16.msra.mxu0 %v799
    %1080 = vmatprep.subr.bf16.mxu0 %v803
    %1081 = vmatpush1.bf16.msra.mxu0 %v802
    %1082 = vmatprep.subr.bf16.mxu0 %v806
    %1083 = vmatpush1.bf16.msra.mxu0 %v805
    %1084 = vmatprep.subr.bf16.mxu0 %v809
    %1085 = vmatpush1.bf16.msra.mxu0 %v808
    %1086 = vmatprep.subr.bf16.mxu0 %v812
    %1087 = vmatpush1.bf16.msra.mxu0 %v811
    %1088 = vmatprep.subr.bf16.mxu0 %v815
    %1089 = vmatpush1.bf16.msra.mxu0 %v814
    %1090 = vmatprep.subr.bf16.mxu0 %v818
    %1091 = vmatpush1.bf16.msra.mxu0 %v817
    %1092 = vmatprep.mubr.bf16.mxu0 %v271
    %1093 = vmatmul.mubr.bf16.gmra.mrb[0].mxu0 %v270
    %v1094 = vpop.f32.mrb[0].mxu0
    %v1095 = vadd.f32 %v280, %v1094
    %v1096 = vpop.f32.mrb[0].mxu0
    %v1097 = vadd.f32 %v284, %v1096
    %v1098 = vpop.f32.mrb[0].mxu0
    %v1099 = vadd.f32 %v280, %v1098
    %v1100 = vpop.f32.mrb[0].mxu0
    %v1101 = vadd.f32 %v284, %v1100
    %1102 = vdwg.mxu0
    %1103 = vmatprep.subr.bf16.mxu0 %v821
    %1104 = vmatpush1.bf16.msra.mxu0 %v820
    %1105 = vmatprep.subr.bf16.mxu0 %v824
    %1106 = vmatpush1.bf16.msra.mxu0 %v823
    %1107 = vmatprep.subr.bf16.mxu0 %v827
    %1108 = vmatpush1.bf16.msra.mxu0 %v826
    %1109 = vmatprep.subr.bf16.mxu0 %v830
    %1110 = vmatpush1.bf16.msra.mxu0 %v829
    %1111 = vmatprep.subr.bf16.mxu0 %v833
    %1112 = vmatpush1.bf16.msra.mxu0 %v832
    %1113 = vmatprep.subr.bf16.mxu0 %v836
    %1114 = vmatpush1.bf16.msra.mxu0 %v835
    %1115 = vmatprep.subr.bf16.mxu0 %v839
    %1116 = vmatpush1.bf16.msra.mxu0 %v838
    %1117 = vmatprep.subr.bf16.mxu0 %v842
    %1118 = vmatpush1.bf16.msra.mxu0 %v841
    %1119 = vmatprep.subr.bf16.mxu0 %v845
    %1120 = vmatpush1.bf16.msra.mxu0 %v844
    %1121 = vmatprep.subr.bf16.mxu0 %v848
    %1122 = vmatpush1.bf16.msra.mxu0 %v847
    %1123 = vmatprep.subr.bf16.mxu0 %v851
    %1124 = vmatpush1.bf16.msra.mxu0 %v850
    %1125 = vmatprep.subr.bf16.mxu0 %v854
    %1126 = vmatpush1.bf16.msra.mxu0 %v853
    %1127 = vmatprep.subr.bf16.mxu0 %v857
    %1128 = vmatpush1.bf16.msra.mxu0 %v856
    %1129 = vmatprep.subr.bf16.mxu0 %v860
    %1130 = vmatpush1.bf16.msra.mxu0 %v859
    %1131 = vmatprep.subr.bf16.mxu0 %v863
    %1132 = vmatpush1.bf16.msra.mxu0 %v862
    %1133 = vmatprep.subr.bf16.mxu0 %v866
    %1134 = vmatpush1.bf16.msra.mxu0 %v865
    %1135 = vmatprep.mubr.bf16.mxu0 %v273
    %1136 = vmatmul.mubr.bf16.gmra.mrb[0].mxu0 %v272
    %v1137 = vpop.f32.mrb[0].mxu0
    %v1138 = vadd.f32 %v1095, %v1137
    %v1139 = vpop.f32.mrb[0].mxu0
    %v1140 = vadd.f32 %v1097, %v1139
    %v1141 = vpop.f32.mrb[0].mxu0
    %v1142 = vadd.f32 %v1099, %v1141
    %v1143 = vpop.f32.mrb[0].mxu0
    %v1144 = vadd.f32 %v1101, %v1143
    %1145 = vdwg.mxu0
    %1146 = vmatprep.subr.bf16.mxu0 %v869
    %1147 = vmatpush1.bf16.msra.mxu0 %v868
    %1148 = vmatprep.subr.bf16.mxu0 %v872
    %1149 = vmatpush1.bf16.msra.mxu0 %v871
    %1150 = vmatprep.subr.bf16.mxu0 %v875
    %1151 = vmatpush1.bf16.msra.mxu0 %v874
    %1152 = vmatprep.subr.bf16.mxu0 %v878
    %1153 = vmatpush1.bf16.msra.mxu0 %v877
    %1154 = vmatprep.subr.bf16.mxu0 %v881
    %1155 = vmatpush1.bf16.msra.mxu0 %v880
    %1156 = vmatprep.subr.bf16.mxu0 %v884
    %1157 = vmatpush1.bf16.msra.mxu0 %v883
    %1158 = vmatprep.subr.bf16.mxu0 %v887
    %1159 = vmatpush1.bf16.msra.mxu0 %v886
    %1160 = vmatprep.subr.bf16.mxu0 %v890
    %1161 = vmatpush1.bf16.msra.mxu0 %v889
    %1162 = vmatprep.subr.bf16.mxu0 %v893
    %1163 = vmatpush1.bf16.msra.mxu0 %v892
    %1164 = vmatprep.subr.bf16.mxu0 %v896
    %1165 = vmatpush1.bf16.msra.mxu0 %v895
    %1166 = vmatprep.subr.bf16.mxu0 %v899
    %1167 = vmatpush1.bf16.msra.mxu0 %v898
    %1168 = vmatprep.subr.bf16.mxu0 %v902
    %1169 = vmatpush1.bf16.msra.mxu0 %v901
    %1170 = vmatprep.subr.bf16.mxu0 %v905
    %1171 = vmatpush1.bf16.msra.mxu0 %v904
    %1172 = vmatprep.subr.bf16.mxu0 %v908
    %1173 = vmatpush1.bf16.msra.mxu0 %v907
    %1174 = vmatprep.subr.bf16.mxu0 %v911
    %1175 = vmatpush1.bf16.msra.mxu0 %v910
    %1176 = vmatprep.subr.bf16.mxu0 %v914
    %1177 = vmatpush1.bf16.msra.mxu0 %v913
    %1178 = vmatprep.mubr.bf16.mxu0 %v275
    %1179 = vmatmul.mubr.bf16.gmra.mrb[0].mxu0 %v274
    %v1180 = vpop.f32.mrb[0].mxu0
    %v1181 = vadd.f32 %v1138, %v1180
    %v1182 = vpop.f32.mrb[0].mxu0
    %v1183 = vadd.f32 %v1140, %v1182
    %v1184 = vpop.f32.mrb[0].mxu0
    %v1185 = vadd.f32 %v1142, %v1184
    %v1186 = vpop.f32.mrb[0].mxu0
    %v1187 = vadd.f32 %v1144, %v1186
    %1188 = vdwg.mxu0
    %1189 = vmatprep.subr.bf16.mxu0 0
    %1190 = vmatpush1.bf16.msra.mxu0 %v774
    %1191 = vmatprep.subr.bf16.mxu0 0
    %1192 = vmatpush1.bf16.msra.mxu0 %v777
    %1193 = vmatprep.subr.bf16.mxu0 0
    %1194 = vmatpush1.bf16.msra.mxu0 %v780
    %1195 = vmatprep.subr.bf16.mxu0 0
    %1196 = vmatpush1.bf16.msra.mxu0 %v783
    %1197 = vmatprep.subr.bf16.mxu0 0
    %1198 = vmatpush1.bf16.msra.mxu0 %v786
    %1199 = vmatprep.subr.bf16.mxu0 0
    %1200 = vmatpush1.bf16.msra.mxu0 %v789
    %1201 = vmatprep.subr.bf16.mxu0 0
    %1202 = vmatpush1.bf16.msra.mxu0 %v792
    %1203 = vmatprep.subr.bf16.mxu0 0
    %1204 = vmatpush1.bf16.msra.mxu0 %v795
    %1205 = vmatprep.subr.bf16.mxu0 0
    %1206 = vmatpush1.bf16.msra.mxu0 %v798
    %1207 = vmatprep.subr.bf16.mxu0 0
    %1208 = vmatpush1.bf16.msra.mxu0 %v801
    %1209 = vmatprep.subr.bf16.mxu0 0
    %1210 = vmatpush1.bf16.msra.mxu0 %v804
    %1211 = vmatprep.subr.bf16.mxu0 0
    %1212 = vmatpush1.bf16.msra.mxu0 %v807
    %1213 = vmatprep.subr.bf16.mxu0 0
    %1214 = vmatpush1.bf16.msra.mxu0 %v810
    %1215 = vmatprep.subr.bf16.mxu0 0
    %1216 = vmatpush1.bf16.msra.mxu0 %v813
    %1217 = vmatprep.subr.bf16.mxu0 0
    %1218 = vmatpush1.bf16.msra.mxu0 %v816
    %1219 = vmatprep.subr.bf16.mxu0 0
    %1220 = vmatpush1.bf16.msra.mxu0 %v819
    %1221 = vmatprep.mubr.bf16.mxu0 %v271
    %1222 = vmatmul.mubr.bf16.gmra.mrb[0].mxu0 %v270
    %v1223 = vpop.f32.mrb[0].mxu0
    %v1224 = vadd.f32 %v288, %v1223
    %v1225 = vpop.f32.mrb[0].mxu0
    %v1226 = vpop.f32.mrb[0].mxu0
    %v1227 = vadd.f32 %v288, %v1226
    %v1228 = vpop.f32.mrb[0].mxu0
    %1229 = vdwg.mxu0
    %1230 = vmatprep.subr.bf16.mxu0 0
    %1231 = vmatpush1.bf16.msra.mxu0 %v822
    %1232 = vmatprep.subr.bf16.mxu0 0
    %1233 = vmatpush1.bf16.msra.mxu0 %v825
    %1234 = vmatprep.subr.bf16.mxu0 0
    %1235 = vmatpush1.bf16.msra.mxu0 %v828
    %1236 = vmatprep.subr.bf16.mxu0 0
    %1237 = vmatpush1.bf16.msra.mxu0 %v831
    %1238 = vmatprep.subr.bf16.mxu0 0
    %1239 = vmatpush1.bf16.msra.mxu0 %v834
    %1240 = vmatprep.subr.bf16.mxu0 0
    %1241 = vmatpush1.bf16.msra.mxu0 %v837
    %1242 = vmatprep.subr.bf16.mxu0 0
    %1243 = vmatpush1.bf16.msra.mxu0 %v840
    %1244 = vmatprep.subr.bf16.mxu0 0
    %1245 = vmatpush1.bf16.msra.mxu0 %v843
    %1246 = vmatprep.subr.bf16.mxu0 0
    %1247 = vmatpush1.bf16.msra.mxu0 %v846
    %1248 = vmatprep.subr.bf16.mxu0 0
    %1249 = vmatpush1.bf16.msra.mxu0 %v849
    %1250 = vmatprep.subr.bf16.mxu0 0
    %1251 = vmatpush1.bf16.msra.mxu0 %v852
    %1252 = vmatprep.subr.bf16.mxu0 0
    %1253 = vmatpush1.bf16.msra.mxu0 %v855
    %1254 = vmatprep.subr.bf16.mxu0 0
    %1255 = vmatpush1.bf16.msra.mxu0 %v858
    %1256 = vmatprep.subr.bf16.mxu0 0
    %1257 = vmatpush1.bf16.msra.mxu0 %v861
    %1258 = vmatprep.subr.bf16.mxu0 0
    %1259 = vmatpush1.bf16.msra.mxu0 %v864
    %1260 = vmatprep.subr.bf16.mxu0 0
    %1261 = vmatpush1.bf16.msra.mxu0 %v867
    %1262 = vmatprep.mubr.bf16.mxu0 %v273
    %1263 = vmatmul.mubr.bf16.gmra.mrb[0].mxu0 %v272
    %v1264 = vpop.f32.mrb[0].mxu0
    %v1265 = vadd.f32 %v1224, %v1264
    %v1266 = vpop.f32.mrb[0].mxu0
    %v1267 = vpop.f32.mrb[0].mxu0
    %v1268 = vadd.f32 %v1227, %v1267
    %v1269 = vpop.f32.mrb[0].mxu0
    %1270 = vdwg.mxu0
    %1271 = vmatprep.subr.bf16.mxu0 0
    %1272 = vmatpush1.bf16.msra.mxu0 %v870
    %1273 = vmatprep.subr.bf16.mxu0 0
    %1274 = vmatpush1.bf16.msra.mxu0 %v873
    %1275 = vmatprep.subr.bf16.mxu0 0
    %1276 = vmatpush1.bf16.msra.mxu0 %v876
    %1277 = vmatprep.subr.bf16.mxu0 0
    %1278 = vmatpush1.bf16.msra.mxu0 %v879
    %1279 = vmatprep.subr.bf16.mxu0 0
    %1280 = vmatpush1.bf16.msra.mxu0 %v882
    %1281 = vmatprep.subr.bf16.mxu0 0
    %1282 = vmatpush1.bf16.msra.mxu0 %v885
    %1283 = vmatprep.subr.bf16.mxu0 0
    %1284 = vmatpush1.bf16.msra.mxu0 %v888
    %1285 = vmatprep.subr.bf16.mxu0 0
    %1286 = vmatpush1.bf16.msra.mxu0 %v891
    %1287 = vmatprep.subr.bf16.mxu0 0
    %1288 = vmatpush1.bf16.msra.mxu0 %v894
    %1289 = vmatprep.subr.bf16.mxu0 0
    %1290 = vmatpush1.bf16.msra.mxu0 %v897
    %1291 = vmatprep.subr.bf16.mxu0 0
    %1292 = vmatpush1.bf16.msra.mxu0 %v900
    %1293 = vmatprep.subr.bf16.mxu0 0
    %1294 = vmatpush1.bf16.msra.mxu0 %v903
    %1295 = vmatprep.subr.bf16.mxu0 0
    %1296 = vmatpush1.bf16.msra.mxu0 %v906
    %1297 = vmatprep.subr.bf16.mxu0 0
    %1298 = vmatpush1.bf16.msra.mxu0 %v909
    %1299 = vmatprep.subr.bf16.mxu0 0
    %1300 = vmatpush1.bf16.msra.mxu0 %v912
    %1301 = vmatprep.subr.bf16.mxu0 0
    %1302 = vmatpush1.bf16.msra.mxu0 %v915
    %1303 = vmatprep.mubr.bf16.mxu0 %v275
    %1304 = vmatmul.mubr.bf16.gmra.mrb[0].mxu0 %v274
    %v1305 = vpop.f32.mrb[0].mxu0
    %v1306 = vadd.f32 %v1265, %v1305
    %v1307 = vpop.f32.mrb[0].mxu0
    %v1308 = vpop.f32.mrb[0].mxu0
    %v1309 = vadd.f32 %v1268, %v1308
    %v1310 = vpop.f32.mrb[0].mxu0
    %1311 = vdwg.mxu0
    %v1312 = vmax.f32 %v1181, 0.0
    %v1313 = vmax.f32 %v1183, 0.0
    %v1314 = vmax.f32 %v1306, 0.0
    %v1315 = vmax.f32 %v1185, 0.0
    %v1316 = vmax.f32 %v1187, 0.0
    %v1317 = vmax.f32 %v1309, 0.0
    %v1318 = vld [vmem:[#allocation4] sm:$0xff]
    %v1319 = vld [vmem:[#allocation4 + $0x8] sm:$0xff]
    %v1320 = vld [vmem:[#allocation4 + $0x10] sm:$0xff]
    %v1321 = vld [vmem:[#allocation4 + $0x18] sm:$0xff]
    %v1322 = vld [vmem:[#allocation4 + $0x20] sm:$0xff]
    %v1323 = vld [vmem:[#allocation4 + $0x28] sm:$0xff]
    %v1324 = vld [vmem:[#allocation4 + $0x30] sm:$0xff]
    %v1325 = vld [vmem:[#allocation4 + $0x38] sm:$0xff]
    %v1326 = vld [vmem:[#allocation4 + $0x40] sm:$0xff]
    %v1327 = vld [vmem:[#allocation4 + $0x48] sm:$0xff]
    %v1328 = vld [vmem:[#allocation4 + $0x50] sm:$0xff]
    %v1329 = vld [vmem:[#allocation4 + $0x58] sm:$0xff]
    %v1330 = vld [vmem:[#allocation4 + $0x60] sm:$0xff]
    %v1331 = vld [vmem:[#allocation4 + $0x68] sm:$0xff]
    %v1332 = vld [vmem:[#allocation4 + $0x70] sm:$0xff]
    %v1333 = vld [vmem:[#allocation4 + $0x78] sm:$0xff]
    %v1334 = vld [vmem:[#allocation4 + $0x80] sm:$0xff]
    %v1335 = vld [vmem:[#allocation4 + $0x88] sm:$0xff]
    %v1336 = vld [vmem:[#allocation4 + $0x90] sm:$0xff]
    %v1337 = vld [vmem:[#allocation4 + $0x98] sm:$0xff]
    %v1338 = vld [vmem:[#allocation4 + $0xa0] sm:$0xff]
    %v1339 = vld [vmem:[#allocation4 + $0xa8] sm:$0xff]
    %v1340 = vld [vmem:[#allocation4 + $0xb0] sm:$0xff]
    %v1341 = vld [vmem:[#allocation4 + $0xb8] sm:$0xff]
    %v1342 = vld [vmem:[#allocation4 + $0xc0] sm:$0xff]
    %v1343 = vld [vmem:[#allocation4 + $0xc8] sm:$0xff]
    %v1344 = vld [vmem:[#allocation4 + $0xd0] sm:$0xff]
    %v1345 = vld [vmem:[#allocation4 + $0xd8] sm:$0xff]
    %v1346 = vld [vmem:[#allocation4 + $0xe0] sm:$0xff]
    %v1347 = vld [vmem:[#allocation4 + $0xe8] sm:$0xff]
    %v1348 = vld [vmem:[#allocation4 + $0xf0] sm:$0xff]
    %v1349 = vld [vmem:[#allocation4 + $0xf8] sm:$0xff]
    %v1350 = vld [vmem:[#allocation4 + $0x100] sm:$0xff]
    %v1351 = vld [vmem:[#allocation4 + $0x108] sm:$0xff]
    %v1352 = vld [vmem:[#allocation4 + $0x110] sm:$0xff]
    %v1353 = vld [vmem:[#allocation4 + $0x118] sm:$0xff]
    %v1354 = vld [vmem:[#allocation4 + $0x120] sm:$0xff]
    %v1355 = vld [vmem:[#allocation4 + $0x128] sm:$0xff]
    %v1356 = vld [vmem:[#allocation4 + $0x130] sm:$0xff]
    %v1357 = vld [vmem:[#allocation4 + $0x138] sm:$0xff]
    %v1358 = vld [vmem:[#allocation4 + $0x140] sm:$0xff]
    %v1359 = vld [vmem:[#allocation4 + $0x148] sm:$0xff]
    %v1360 = vld [vmem:[#allocation4 + $0x150] sm:$0xff]
    %v1361 = vld [vmem:[#allocation4 + $0x158] sm:$0xff]
    %v1362 = vld [vmem:[#allocation4 + $0x160] sm:$0xff]
    %v1363 = vld [vmem:[#allocation4 + $0x168] sm:$0xff]
    %v1364 = vld [vmem:[#allocation4 + $0x170] sm:$0xff]
    %v1365 = vld [vmem:[#allocation4 + $0x178] sm:$0xff]
    %s1366 = scalar_lea.vmem %s5, 1
    %v1367 = vld [vmem:[%s1366] ss:$8 sm:$0x3]
    %v1368 = vpack.c.bf16 %v1315, %v1312
    %v1369 = vpack.c.bf16 %v1316, %v1313
    %v1370 = vpack.c.bf16 %v1317, %v1314
    %v1372 = vlaneseq
    %v1373 = vshrl.u32 %v1372, 7
    %v1374 = vsub.s32 0, %v1373
    %v1375 = vrot.slane %v1367, %v1374
    %v1376 = vlaneseq
    %v1377 = vshrl.u32 %v1376, 7
    %v1378 = vsub.s32 1, %v1377
    %v1379 = vrot.slane %v1367, %v1378
    %v1430 = vunpack.c.l.b16 %v1318
    %v1431 = vunpack.c.h.b16 %v1318
    %v1432 = vunpack.c.l.b16 %v1319
    %v1433 = vunpack.c.h.b16 %v1319
    %v1434 = vunpack.c.l.b16 %v1320
    %v1435 = vunpack.c.h.b16 %v1320
    %v1436 = vunpack.c.l.b16 %v1321
    %v1437 = vunpack.c.h.b16 %v1321
    %v1438 = vunpack.c.l.b16 %v1322
    %v1439 = vunpack.c.h.b16 %v1322
    %v1440 = vunpack.c.l.b16 %v1323
    %v1441 = vunpack.c.h.b16 %v1323
    %v1442 = vunpack.c.l.b16 %v1324
    %v1443 = vunpack.c.h.b16 %v1324
    %v1444 = vunpack.c.l.b16 %v1325
    %v1445 = vunpack.c.h.b16 %v1325
    %v1446 = vunpack.c.l.b16 %v1326
    %v1447 = vunpack.c.h.b16 %v1326
    %v1448 = vunpack.c.l.b16 %v1327
    %v1449 = vunpack.c.h.b16 %v1327
    %v1450 = vunpack.c.l.b16 %v1328
    %v1451 = vunpack.c.h.b16 %v1328
    %v1452 = vunpack.c.l.b16 %v1329
    %v1453 = vunpack.c.h.b16 %v1329
    %v1454 = vunpack.c.l.b16 %v1330
    %v1455 = vunpack.c.h.b16 %v1330
    %v1456 = vunpack.c.l.b16 %v1331
    %v1457 = vunpack.c.h.b16 %v1331
    %v1458 = vunpack.c.l.b16 %v1332
    %v1459 = vunpack.c.h.b16 %v1332
    %v1460 = vunpack.c.l.b16 %v1333
    %v1461 = vunpack.c.h.b16 %v1333
    %v1462 = vunpack.c.l.b16 %v1334
    %v1463 = vunpack.c.h.b16 %v1334
    %v1464 = vunpack.c.l.b16 %v1335
    %v1465 = vunpack.c.h.b16 %v1335
    %v1466 = vunpack.c.l.b16 %v1336
    %v1467 = vunpack.c.h.b16 %v1336
    %v1468 = vunpack.c.l.b16 %v1337
    %v1469 = vunpack.c.h.b16 %v1337
    %v1470 = vunpack.c.l.b16 %v1338
    %v1471 = vunpack.c.h.b16 %v1338
    %v1472 = vunpack.c.l.b16 %v1339
    %v1473 = vunpack.c.h.b16 %v1339
    %v1474 = vunpack.c.l.b16 %v1340
    %v1475 = vunpack.c.h.b16 %v1340
    %v1476 = vunpack.c.l.b16 %v1341
    %v1477 = vunpack.c.h.b16 %v1341
    %v1478 = vunpack.c.l.b16 %v1342
    %v1479 = vunpack.c.h.b16 %v1342
    %v1480 = vunpack.c.l.b16 %v1343
    %v1481 = vunpack.c.h.b16 %v1343
    %v1482 = vunpack.c.l.b16 %v1344
    %v1483 = vunpack.c.h.b16 %v1344
    %v1484 = vunpack.c.l.b16 %v1345
    %v1485 = vunpack.c.h.b16 %v1345
    %v1486 = vunpack.c.l.b16 %v1346
    %v1487 = vunpack.c.h.b16 %v1346
    %v1488 = vunpack.c.l.b16 %v1347
    %v1489 = vunpack.c.h.b16 %v1347
    %v1490 = vunpack.c.l.b16 %v1348
    %v1491 = vunpack.c.h.b16 %v1348
    %v1492 = vunpack.c.l.b16 %v1349
    %v1493 = vunpack.c.h.b16 %v1349
    %v1494 = vunpack.c.l.b16 %v1350
    %v1495 = vunpack.c.h.b16 %v1350
    %v1496 = vunpack.c.l.b16 %v1351
    %v1497 = vunpack.c.h.b16 %v1351
    %v1498 = vunpack.c.l.b16 %v1352
    %v1499 = vunpack.c.h.b16 %v1352
    %v1500 = vunpack.c.l.b16 %v1353
    %v1501 = vunpack.c.h.b16 %v1353
    %v1502 = vunpack.c.l.b16 %v1354
    %v1503 = vunpack.c.h.b16 %v1354
    %v1504 = vunpack.c.l.b16 %v1355
    %v1505 = vunpack.c.h.b16 %v1355
    %v1506 = vunpack.c.l.b16 %v1356
    %v1507 = vunpack.c.h.b16 %v1356
    %v1508 = vunpack.c.l.b16 %v1357
    %v1509 = vunpack.c.h.b16 %v1357
    %v1510 = vunpack.c.l.b16 %v1358
    %v1511 = vunpack.c.h.b16 %v1358
    %v1512 = vunpack.c.l.b16 %v1359
    %v1513 = vunpack.c.h.b16 %v1359
    %v1514 = vunpack.c.l.b16 %v1360
    %v1515 = vunpack.c.h.b16 %v1360
    %v1516 = vunpack.c.l.b16 %v1361
    %v1517 = vunpack.c.h.b16 %v1361
    %v1518 = vunpack.c.l.b16 %v1362
    %v1519 = vunpack.c.h.b16 %v1362
    %v1520 = vunpack.c.l.b16 %v1363
    %v1521 = vunpack.c.h.b16 %v1363
    %v1522 = vunpack.c.l.b16 %v1364
    %v1523 = vunpack.c.h.b16 %v1364
    %v1524 = vunpack.c.l.b16 %v1365
    %v1525 = vunpack.c.h.b16 %v1365
    %v1526 = vpack.c.b16 %v1432, %v1430
    %v1527 = vpack.c.b16 %v1433, %v1431
    %v1528 = vpack.c.b16 %v1436, %v1434
    %v1529 = vpack.c.b16 %v1437, %v1435
    %v1530 = vpack.c.b16 %v1440, %v1438
    %v1531 = vpack.c.b16 %v1441, %v1439
    %v1532 = vpack.c.b16 %v1444, %v1442
    %v1533 = vpack.c.b16 %v1445, %v1443
    %v1534 = vpack.c.b16 %v1448, %v1446
    %v1535 = vpack.c.b16 %v1449, %v1447
    %v1536 = vpack.c.b16 %v1452, %v1450
    %v1537 = vpack.c.b16 %v1453, %v1451
    %v1538 = vpack.c.b16 %v1456, %v1454
    %v1539 = vpack.c.b16 %v1457, %v1455
    %v1540 = vpack.c.b16 %v1460, %v1458
    %v1541 = vpack.c.b16 %v1461, %v1459
    %v1542 = vpack.c.b16 %v1464, %v1462
    %v1543 = vpack.c.b16 %v1465, %v1463
    %v1544 = vpack.c.b16 %v1468, %v1466
    %v1545 = vpack.c.b16 %v1469, %v1467
    %v1546 = vpack.c.b16 %v1472, %v1470
    %v1547 = vpack.c.b16 %v1473, %v1471
    %v1548 = vpack.c.b16 %v1476, %v1474
    %v1549 = vpack.c.b16 %v1477, %v1475
    %v1550 = vpack.c.b16 %v1480, %v1478
    %v1551 = vpack.c.b16 %v1481, %v1479
    %v1552 = vpack.c.b16 %v1484, %v1482
    %v1553 = vpack.c.b16 %v1485, %v1483
    %v1554 = vpack.c.b16 %v1488, %v1486
    %v1555 = vpack.c.b16 %v1489, %v1487
    %v1556 = vpack.c.b16 %v1492, %v1490
    %v1557 = vpack.c.b16 %v1493, %v1491
    %v1558 = vpack.c.b16 %v1496, %v1494
    %v1559 = vpack.c.b16 %v1497, %v1495
    %v1560 = vpack.c.b16 %v1500, %v1498
    %v1561 = vpack.c.b16 %v1501, %v1499
    %v1562 = vpack.c.b16 %v1504, %v1502
    %v1563 = vpack.c.b16 %v1505, %v1503
    %v1564 = vpack.c.b16 %v1508, %v1506
    %v1565 = vpack.c.b16 %v1509, %v1507
    %v1566 = vpack.c.b16 %v1512, %v1510
    %v1567 = vpack.c.b16 %v1513, %v1511
    %v1568 = vpack.c.b16 %v1516, %v1514
    %v1569 = vpack.c.b16 %v1517, %v1515
    %v1570 = vpack.c.b16 %v1520, %v1518
    %v1571 = vpack.c.b16 %v1521, %v1519
    %v1572 = vpack.c.b16 %v1524, %v1522
    %v1573 = vpack.c.b16 %v1525, %v1523
    %1622 = vmatprep.subr.bf16.mxu0 %v1527
    %1623 = vmatpush1.bf16.msra.mxu0 %v1526
    %1624 = vmatprep.subr.bf16.mxu0 %v1529
    %1625 = vmatpush1.bf16.msra.mxu0 %v1528
    %1626 = vmatprep.subr.bf16.mxu0 %v1531
    %1627 = vmatpush1.bf16.msra.mxu0 %v1530
    %1628 = vmatprep.subr.bf16.mxu0 %v1533
    %1629 = vmatpush1.bf16.msra.mxu0 %v1532
    %1630 = vmatprep.subr.bf16.mxu0 %v1535
    %1631 = vmatpush1.bf16.msra.mxu0 %v1534
    %1632 = vmatprep.subr.bf16.mxu0 %v1537
    %1633 = vmatpush1.bf16.msra.mxu0 %v1536
    %1634 = vmatprep.subr.bf16.mxu0 %v1539
    %1635 = vmatpush1.bf16.msra.mxu0 %v1538
    %1636 = vmatprep.subr.bf16.mxu0 %v1541
    %1637 = vmatpush1.bf16.msra.mxu0 %v1540
    %1638 = vmatprep.subr.bf16.mxu0 %v1543
    %1639 = vmatpush1.bf16.msra.mxu0 %v1542
    %1640 = vmatprep.subr.bf16.mxu0 %v1545
    %1641 = vmatpush1.bf16.msra.mxu0 %v1544
    %1642 = vmatprep.subr.bf16.mxu0 %v1547
    %1643 = vmatpush1.bf16.msra.mxu0 %v1546
    %1644 = vmatprep.subr.bf16.mxu0 %v1549
    %1645 = vmatpush1.bf16.msra.mxu0 %v1548
    %1646 = vmatprep.subr.bf16.mxu0 %v1551
    %1647 = vmatpush1.bf16.msra.mxu0 %v1550
    %1648 = vmatprep.subr.bf16.mxu0 %v1553
    %1649 = vmatpush1.bf16.msra.mxu0 %v1552
    %1650 = vmatprep.subr.bf16.mxu0 %v1555
    %1651 = vmatpush1.bf16.msra.mxu0 %v1554
    %1652 = vmatprep.subr.bf16.mxu0 %v1557
    %1653 = vmatpush1.bf16.msra.mxu0 %v1556
    %1654 = vmatprep.mubr.bf16.mxu0 %v1369
    %1655 = vmatmul.mubr.bf16.gmra.mrb[0].mxu0 %v1368
    %v1656 = vpop.f32.mrb[0].mxu0
    %v1657 = vadd.f32 %v1375, %v1656
    %v1658 = vpop.f32.mrb[0].mxu0
    %v1659 = vadd.f32 %v1379, %v1658
    %v1660 = vpop.f32.mrb[0].mxu0
    %v1661 = vadd.f32 %v1375, %v1660
    %v1662 = vpop.f32.mrb[0].mxu0
    %v1663 = vadd.f32 %v1379, %v1662
    %1664 = vdwg.mxu0
    %1665 = vmatprep.subr.bf16.mxu0 %v1559
    %1666 = vmatpush1.bf16.msra.mxu0 %v1558
    %1667 = vmatprep.subr.bf16.mxu0 %v1561
    %1668 = vmatpush1.bf16.msra.mxu0 %v1560
    %1669 = vmatprep.subr.bf16.mxu0 %v1563
    %1670 = vmatpush1.bf16.msra.mxu0 %v1562
    %1671 = vmatprep.subr.bf16.mxu0 %v1565
    %1672 = vmatpush1.bf16.msra.mxu0 %v1564
    %1673 = vmatprep.subr.bf16.mxu0 %v1567
    %1674 = vmatpush1.bf16.msra.mxu0 %v1566
    %1675 = vmatprep.subr.bf16.mxu0 %v1569
    %1676 = vmatpush1.bf16.msra.mxu0 %v1568
    %1677 = vmatprep.subr.bf16.mxu0 %v1571
    %1678 = vmatpush1.bf16.msra.mxu0 %v1570
    %1679 = vmatprep.subr.bf16.mxu0 %v1573
    %1680 = vmatpush1.bf16.msra.mxu0 %v1572
    %1681 = vmatprep.subr.bf16.mxu0 0
    %1682 = vmatpush1.bf16.msra.mxu0 0
    %1683 = vmatprep.subr.bf16.mxu0 0
    %1684 = vmatpush1.bf16.msra.mxu0 0
    %1685 = vmatprep.subr.bf16.mxu0 0
    %1686 = vmatpush1.bf16.msra.mxu0 0
    %1687 = vmatprep.subr.bf16.mxu0 0
    %1688 = vmatpush1.bf16.msra.mxu0 0
    %1689 = vmatprep.subr.bf16.mxu0 0
    %1690 = vmatpush1.bf16.msra.mxu0 0
    %1691 = vmatprep.subr.bf16.mxu0 0
    %1692 = vmatpush1.bf16.msra.mxu0 0
    %1693 = vmatprep.subr.bf16.mxu0 0
    %1694 = vmatpush1.bf16.msra.mxu0 0
    %1695 = vmatprep.subr.bf16.mxu0 0
    %1696 = vmatpush1.bf16.msra.mxu0 0
    %1697 = vmatprep.mubr.bf16.mxu0 0
    %1698 = vmatmul.mubr.bf16.gmra.mrb[0].mxu0 %v1370
    %v1699 = vpop.f32.mrb[0].mxu0
    %v1700 = vadd.f32 %v1657, %v1699
    %v1701 = vpop.f32.mrb[0].mxu0
    %v1702 = vadd.f32 %v1659, %v1701
    %v1703 = vpop.f32.mrb[0].mxu0
    %v1704 = vadd.f32 %v1661, %v1703
    %v1705 = vpop.f32.mrb[0].mxu0
    %v1706 = vadd.f32 %v1663, %v1705
    %1707 = vdwg.mxu0
    %v1708 = vmax.f32 %v1700, 0.0
    %v1709 = vmax.f32 %v1702, 0.0
    %v1710 = vmax.f32 %v1704, 0.0
    %v1711 = vmax.f32 %v1706, 0.0
    %v1712 = vld [vmem:[%s3] sm:$0xf]
    %v1713 = vld [vmem:[%s3 + $0x4] sm:$0xf]
    %v1714 = vld [vmem:[%s3 + $0x8] sm:$0xf]
    %v1715 = vld [vmem:[%s3 + $0xc] sm:$0xf]
    %v1716 = vld [vmem:[%s3 + $0x10] sm:$0xf]
    %v1717 = vld [vmem:[%s3 + $0x14] sm:$0xf]
    %v1718 = vld [vmem:[%s3 + $0x18] sm:$0xf]
    %v1719 = vld [vmem:[%s3 + $0x1c] sm:$0xf]
    %v1720 = vld [vmem:[%s3 + $0x20] sm:$0xf]
    %v1721 = vld [vmem:[%s3 + $0x24] sm:$0xf]
    %v1722 = vld [vmem:[%s3 + $0x28] sm:$0xf]
    %v1723 = vld [vmem:[%s3 + $0x2c] sm:$0xf]
    %v1724 = vld [vmem:[%s3 + $0x30] sm:$0xf]
    %v1725 = vld [vmem:[%s3 + $0x34] sm:$0xf]
    %v1726 = vld [vmem:[%s3 + $0x38] sm:$0xf]
    %v1727 = vld [vmem:[%s3 + $0x3c] sm:$0xf]
    %v1728 = vld [vmem:[%s3 + $0x40] sm:$0xf]
    %v1729 = vld [vmem:[%s3 + $0x44] sm:$0xf]
    %v1730 = vld [vmem:[%s3 + $0x48] sm:$0xf]
    %v1731 = vld [vmem:[%s3 + $0x4c] sm:$0xf]
    %v1732 = vld [vmem:[%s3 + $0x50] sm:$0xf]
    %v1733 = vld [vmem:[%s3 + $0x54] sm:$0xf]
    %v1734 = vld [vmem:[%s3 + $0x58] sm:$0xf]
    %v1735 = vld [vmem:[%s3 + $0x5c] sm:$0xf]
    %v1736 = vld [vmem:[%s3 + $0x60] sm:$0xf]
    %v1737 = vld [vmem:[%s3 + $0x64] sm:$0xf]
    %v1738 = vld [vmem:[%s3 + $0x68] sm:$0xf]
    %v1739 = vld [vmem:[%s3 + $0x6c] sm:$0xf]
    %v1740 = vld [vmem:[%s3 + $0x70] sm:$0xf]
    %v1741 = vld [vmem:[%s3 + $0x74] sm:$0xf]
    %v1742 = vld [vmem:[%s3 + $0x78] sm:$0xf]
    %v1743 = vld [vmem:[%s3 + $0x7c] sm:$0xf]
    %v1744 = vld [vmem:[%s5 + $0x2] ss:$0 sm:$0xff]
    %v1745 = vpack.c.bf16 %v1710, %v1708
    %v1746 = vpack.c.bf16 %v1711, %v1709
    %v1779 = vunpack.c.l.b16 %v1712
    %v1780 = vunpack.c.l.b16 %v1713
    %v1781 = vunpack.c.l.b16 %v1714
    %v1782 = vunpack.c.l.b16 %v1715
    %v1783 = vunpack.c.l.b16 %v1716
    %v1784 = vunpack.c.l.b16 %v1717
    %v1785 = vunpack.c.l.b16 %v1718
    %v1786 = vunpack.c.l.b16 %v1719
    %v1787 = vunpack.c.l.b16 %v1720
    %v1788 = vunpack.c.l.b16 %v1721
    %v1789 = vunpack.c.l.b16 %v1722
    %v1790 = vunpack.c.l.b16 %v1723
    %v1791 = vunpack.c.l.b16 %v1724
    %v1792 = vunpack.c.l.b16 %v1725
    %v1793 = vunpack.c.l.b16 %v1726
    %v1794 = vunpack.c.l.b16 %v1727
    %v1795 = vunpack.c.l.b16 %v1728
    %v1796 = vunpack.c.l.b16 %v1729
    %v1797 = vunpack.c.l.b16 %v1730
    %v1798 = vunpack.c.l.b16 %v1731
    %v1799 = vunpack.c.l.b16 %v1732
    %v1800 = vunpack.c.l.b16 %v1733
    %v1801 = vunpack.c.l.b16 %v1734
    %v1802 = vunpack.c.l.b16 %v1735
    %v1803 = vunpack.c.l.b16 %v1736
    %v1804 = vunpack.c.l.b16 %v1737
    %v1805 = vunpack.c.l.b16 %v1738
    %v1806 = vunpack.c.l.b16 %v1739
    %v1807 = vunpack.c.l.b16 %v1740
    %v1808 = vunpack.c.l.b16 %v1741
    %v1809 = vunpack.c.l.b16 %v1742
    %v1810 = vunpack.c.l.b16 %v1743
    %v1811 = vpack.c.b16 %v1780, %v1779
    %v1812 = vpack.c.b16 %v1782, %v1781
    %v1813 = vpack.c.b16 %v1784, %v1783
    %v1814 = vpack.c.b16 %v1786, %v1785
    %v1815 = vpack.c.b16 %v1788, %v1787
    %v1816 = vpack.c.b16 %v1790, %v1789
    %v1817 = vpack.c.b16 %v1792, %v1791
    %v1818 = vpack.c.b16 %v1794, %v1793
    %v1819 = vpack.c.b16 %v1796, %v1795
    %v1820 = vpack.c.b16 %v1798, %v1797
    %v1821 = vpack.c.b16 %v1800, %v1799
    %v1822 = vpack.c.b16 %v1802, %v1801
    %v1823 = vpack.c.b16 %v1804, %v1803
    %v1824 = vpack.c.b16 %v1806, %v1805
    %v1825 = vpack.c.b16 %v1808, %v1807
    %v1826 = vpack.c.b16 %v1810, %v1809
    %1843 = vmatprep.subr.bf16.mxu0 0
    %1844 = vmatpush1.bf16.msra.mxu0 %v1811
    %1845 = vmatprep.subr.bf16.mxu0 0
    %1846 = vmatpush1.bf16.msra.mxu0 %v1812
    %1847 = vmatprep.subr.bf16.mxu0 0
    %1848 = vmatpush1.bf16.msra.mxu0 %v1813
    %1849 = vmatprep.subr.bf16.mxu0 0
    %1850 = vmatpush1.bf16.msra.mxu0 %v1814
    %1851 = vmatprep.subr.bf16.mxu0 0
    %1852 = vmatpush1.bf16.msra.mxu0 %v1815
    %1853 = vmatprep.subr.bf16.mxu0 0
    %1854 = vmatpush1.bf16.msra.mxu0 %v1816
    %1855 = vmatprep.subr.bf16.mxu0 0
    %1856 = vmatpush1.bf16.msra.mxu0 %v1817
    %1857 = vmatprep.subr.bf16.mxu0 0
    %1858 = vmatpush1.bf16.msra.mxu0 %v1818
    %1859 = vmatprep.subr.bf16.mxu0 0
    %1860 = vmatpush1.bf16.msra.mxu0 %v1819
    %1861 = vmatprep.subr.bf16.mxu0 0
    %1862 = vmatpush1.bf16.msra.mxu0 %v1820
    %1863 = vmatprep.subr.bf16.mxu0 0
    %1864 = vmatpush1.bf16.msra.mxu0 %v1821
    %1865 = vmatprep.subr.bf16.mxu0 0
    %1866 = vmatpush1.bf16.msra.mxu0 %v1822
    %1867 = vmatprep.subr.bf16.mxu0 0
    %1868 = vmatpush1.bf16.msra.mxu0 %v1823
    %1869 = vmatprep.subr.bf16.mxu0 0
    %1870 = vmatpush1.bf16.msra.mxu0 %v1824
    %1871 = vmatprep.subr.bf16.mxu0 0
    %1872 = vmatpush1.bf16.msra.mxu0 %v1825
    %1873 = vmatprep.subr.bf16.mxu0 0
    %1874 = vmatpush1.bf16.msra.mxu0 %v1826
    %1875 = vmatprep.mubr.bf16.mxu0 %v1746
    %1876 = vmatmul.mubr.bf16.gmra.mrb[0].mxu0 %v1745
    %v1877 = vpop.f32.mrb[0].mxu0
    %v1878 = vadd.f32 %v1744, %v1877
    %v1879 = vpop.f32.mrb[0].mxu0
    %v1880 = vpop.f32.mrb[0].mxu0
    %v1881 = vadd.f32 %v1744, %v1880
    %v1882 = vpop.f32.mrb[0].mxu0
    %1883 = vdwg.mxu0
    %v1884 = vmax.f32 %v1878, 0.0
    %v1885 = vmax.f32 %v1881, 0.0
    %v1886 = vld [vmem:[#allocation6] sm:$0xf]
    %v1887 = vld [vmem:[#allocation6 + $0x4] sm:$0xf]
    %v1888 = vld [vmem:[#allocation6 + $0x8] sm:$0xf]
    %v1889 = vld [vmem:[#allocation6 + $0xc] sm:$0xf]
    %v1890 = vld [vmem:[#allocation6 + $0x10] sm:$0xf]
    %v1891 = vld [vmem:[#allocation6 + $0x14] sm:$0xf]
    %v1892 = vld [vmem:[#allocation6 + $0x18] sm:$0xf]
    %v1893 = vld [vmem:[#allocation6 + $0x1c] sm:$0xf]
    %v1894 = vld [vmem:[#allocation6 + $0x20] sm:$0xf]
    %v1895 = vld [vmem:[#allocation6 + $0x24] sm:$0xf]
    %v1896 = vld [vmem:[#allocation6 + $0x28] sm:$0xf]
    %v1897 = vld [vmem:[#allocation6 + $0x2c] sm:$0xf]
    %v1898 = vld [vmem:[#allocation6 + $0x30] sm:$0xf]
    %v1899 = vld [vmem:[#allocation6 + $0x34] sm:$0xf]
    %v1900 = vld [vmem:[#allocation6 + $0x38] sm:$0xf]
    %v1901 = vld [vmem:[#allocation6 + $0x3c] sm:$0xf]
    %v1902 = vld [vmem:[%s5 + $0x3] ss:$0 sm:$0xff]
    %v1903 = vpack.c.bf16 %v1885, %v1884
    %v1920 = vunpack.c.l.b16 %v1886
    %v1921 = vunpack.c.l.b16 %v1887
    %v1922 = vunpack.c.l.b16 %v1888
    %v1923 = vunpack.c.l.b16 %v1889
    %v1924 = vunpack.c.l.b16 %v1890
    %v1925 = vunpack.c.l.b16 %v1891
    %v1926 = vunpack.c.l.b16 %v1892
    %v1927 = vunpack.c.l.b16 %v1893
    %v1928 = vunpack.c.l.b16 %v1894
    %v1929 = vunpack.c.l.b16 %v1895
    %v1930 = vunpack.c.l.b16 %v1896
    %v1931 = vunpack.c.l.b16 %v1897
    %v1932 = vunpack.c.l.b16 %v1898
    %v1933 = vunpack.c.l.b16 %v1899
    %v1934 = vunpack.c.l.b16 %v1900
    %v1935 = vunpack.c.l.b16 %v1901
    %v1936 = vpack.c.b16 %v1921, %v1920
    %v1937 = vpack.c.b16 %v1923, %v1922
    %v1938 = vpack.c.b16 %v1925, %v1924
    %v1939 = vpack.c.b16 %v1927, %v1926
    %v1940 = vpack.c.b16 %v1929, %v1928
    %v1941 = vpack.c.b16 %v1931, %v1930
    %v1942 = vpack.c.b16 %v1933, %v1932
    %v1943 = vpack.c.b16 %v1935, %v1934
    %1952 = vmatprep.subr.bf16.mxu0 0
    %1953 = vmatpush1.bf16.msra.mxu0 %v1936
    %1954 = vmatprep.subr.bf16.mxu0 0
    %1955 = vmatpush1.bf16.msra.mxu0 %v1937
    %1956 = vmatprep.subr.bf16.mxu0 0
    %1957 = vmatpush1.bf16.msra.mxu0 %v1938
    %1958 = vmatprep.subr.bf16.mxu0 0
    %1959 = vmatpush1.bf16.msra.mxu0 %v1939
    %1960 = vmatprep.subr.bf16.mxu0 0
    %1961 = vmatpush1.bf16.msra.mxu0 %v1940
    %1962 = vmatprep.subr.bf16.mxu0 0
    %1963 = vmatpush1.bf16.msra.mxu0 %v1941
    %1964 = vmatprep.subr.bf16.mxu0 0
    %1965 = vmatpush1.bf16.msra.mxu0 %v1942
    %1966 = vmatprep.subr.bf16.mxu0 0
    %1967 = vmatpush1.bf16.msra.mxu0 %v1943
    %1968 = vmatprep.subr.bf16.mxu0 0
    %1969 = vmatpush1.bf16.msra.mxu0 0
    %1970 = vmatprep.subr.bf16.mxu0 0
    %1971 = vmatpush1.bf16.msra.mxu0 0
    %1972 = vmatprep.subr.bf16.mxu0 0
    %1973 = vmatpush1.bf16.msra.mxu0 0
    %1974 = vmatprep.subr.bf16.mxu0 0
    %1975 = vmatpush1.bf16.msra.mxu0 0
    %1976 = vmatprep.subr.bf16.mxu0 0
    %1977 = vmatpush1.bf16.msra.mxu0 0
    %1978 = vmatprep.subr.bf16.mxu0 0
    %1979 = vmatpush1.bf16.msra.mxu0 0
    %1980 = vmatprep.subr.bf16.mxu0 0
    %1981 = vmatpush1.bf16.msra.mxu0 0
    %1982 = vmatprep.subr.bf16.mxu0 0
    %1983 = vmatpush1.bf16.msra.mxu0 0
    %1984 = vmatprep.mubr.bf16.mxu0 0
    %1985 = vmatmul.mubr.bf16.gmra.mrb[0].mxu0 %v1903
    %v1986 = vpop.f32.mrb[0].mxu0
    %v1987 = vadd.f32 %v1902, %v1986
    %v1988 = vpop.f32.mrb[0].mxu0
    %v1989 = vpop.f32.mrb[0].mxu0
    %v1990 = vadd.f32 %v1902, %v1989
    %v1991 = vpop.f32.mrb[0].mxu0
    %1992 = vdwg.mxu0
    %v1993 = vmax.f32 %v1987, 0.0
    %v1994 = vmax.f32 %v1990, 0.0
    %s1995 = scalar_lea.vmem [#allocation6], 64
    %v1996 = vld [vmem:[%s1995] sm:$0xf]
    %v1997 = vld [vmem:[%s1995 + $0x4] sm:$0xf]
    %v1998 = vld [vmem:[%s1995 + $0x8] sm:$0xf]
    %v1999 = vld [vmem:[%s1995 + $0xc] sm:$0xf]
    %v2000 = vld [vmem:[%s1995 + $0x10] sm:$0xf]
    %v2001 = vld [vmem:[%s1995 + $0x14] sm:$0xf]
    %v2002 = vld [vmem:[%s1995 + $0x18] sm:$0xf]
    %v2003 = vld [vmem:[%s1995 + $0x1c] sm:$0xf]
    %v2004 = vld [vmem:[%s1995 + $0x20] sm:$0xf]
    %v2005 = vld [vmem:[%s1995 + $0x24] sm:$0xf]
    %v2006 = vld [vmem:[%s1995 + $0x28] sm:$0xf]
    %v2007 = vld [vmem:[%s1995 + $0x2c] sm:$0xf]
    %v2008 = vld [vmem:[%s1995 + $0x30] sm:$0xf]
    %v2009 = vld [vmem:[%s1995 + $0x34] sm:$0xf]
    %v2010 = vld [vmem:[%s1995 + $0x38] sm:$0xf]
    %v2011 = vld [vmem:[%s1995 + $0x3c] sm:$0xf]
    %v2012 = vld [vmem:[%s5 + $0x4] ss:$0 sm:$0xff]
    %v2013 = vpack.c.bf16 %v1994, %v1993
    %v2030 = vunpack.c.l.b16 %v1996
    %v2031 = vunpack.c.l.b16 %v1997
    %v2032 = vunpack.c.l.b16 %v1998
    %v2033 = vunpack.c.l.b16 %v1999
    %v2034 = vunpack.c.l.b16 %v2000
    %v2035 = vunpack.c.l.b16 %v2001
    %v2036 = vunpack.c.l.b16 %v2002
    %v2037 = vunpack.c.l.b16 %v2003
    %v2038 = vunpack.c.l.b16 %v2004
    %v2039 = vunpack.c.l.b16 %v2005
    %v2040 = vunpack.c.l.b16 %v2006
    %v2041 = vunpack.c.l.b16 %v2007
    %v2042 = vunpack.c.l.b16 %v2008
    %v2043 = vunpack.c.l.b16 %v2009
    %v2044 = vunpack.c.l.b16 %v2010
    %v2045 = vunpack.c.l.b16 %v2011
    %v2046 = vpack.c.b16 %v2031, %v2030
    %v2047 = vpack.c.b16 %v2033, %v2032
    %v2048 = vpack.c.b16 %v2035, %v2034
    %v2049 = vpack.c.b16 %v2037, %v2036
    %v2050 = vpack.c.b16 %v2039, %v2038
    %v2051 = vpack.c.b16 %v2041, %v2040
    %v2052 = vpack.c.b16 %v2043, %v2042
    %v2053 = vpack.c.b16 %v2045, %v2044
    %2062 = vmatprep.subr.bf16.mxu0 0
    %2063 = vmatpush1.bf16.msra.mxu0 %v2046
    %2064 = vmatprep.subr.bf16.mxu0 0
    %2065 = vmatpush1.bf16.msra.mxu0 %v2047
    %2066 = vmatprep.subr.bf16.mxu0 0
    %2067 = vmatpush1.bf16.msra.mxu0 %v2048
    %2068 = vmatprep.subr.bf16.mxu0 0
    %2069 = vmatpush1.bf16.msra.mxu0 %v2049
    %2070 = vmatprep.subr.bf16.mxu0 0
    %2071 = vmatpush1.bf16.msra.mxu0 %v2050
    %2072 = vmatprep.subr.bf16.mxu0 0
    %2073 = vmatpush1.bf16.msra.mxu0 %v2051
    %2074 = vmatprep.subr.bf16.mxu0 0
    %2075 = vmatpush1.bf16.msra.mxu0 %v2052
    %2076 = vmatprep.subr.bf16.mxu0 0
    %2077 = vmatpush1.bf16.msra.mxu0 %v2053
    %2078 = vmatprep.subr.bf16.mxu0 0
    %2079 = vmatpush1.bf16.msra.mxu0 0
    %2080 = vmatprep.subr.bf16.mxu0 0
    %2081 = vmatpush1.bf16.msra.mxu0 0
    %2082 = vmatprep.subr.bf16.mxu0 0
    %2083 = vmatpush1.bf16.msra.mxu0 0
    %2084 = vmatprep.subr.bf16.mxu0 0
    %2085 = vmatpush1.bf16.msra.mxu0 0
    %2086 = vmatprep.subr.bf16.mxu0 0
    %2087 = vmatpush1.bf16.msra.mxu0 0
    %2088 = vmatprep.subr.bf16.mxu0 0
    %2089 = vmatpush1.bf16.msra.mxu0 0
    %2090 = vmatprep.subr.bf16.mxu0 0
    %2091 = vmatpush1.bf16.msra.mxu0 0
    %2092 = vmatprep.subr.bf16.mxu0 0
    %2093 = vmatpush1.bf16.msra.mxu0 0
    %2094 = vmatprep.mubr.bf16.mxu0 0
    %2095 = vmatmul.mubr.bf16.gmra.mrb[0].mxu0 %v2013
    %v2096 = vpop.f32.mrb[0].mxu0
    %v2097 = vadd.f32 %v2012, %v2096
    %v2098 = vpop.f32.mrb[0].mxu0
    %v2099 = vpop.f32.mrb[0].mxu0
    %v2100 = vadd.f32 %v2012, %v2099
    %v2101 = vpop.f32.mrb[0].mxu0
    %2102 = vdwg.mxu0
    %v2103 = vmax.f32 %v2097, 0.0
    %v2104 = vmax.f32 %v2100, 0.0
    %s2105 = scalar_lea.vmem [#allocation6], 128
    %v2106 = vld [vmem:[%s2105] sm:$0xf]
    %v2107 = vld [vmem:[%s2105 + $0x4] sm:$0xf]
    %v2108 = vld [vmem:[%s2105 + $0x8] sm:$0xf]
    %v2109 = vld [vmem:[%s2105 + $0xc] sm:$0xf]
    %v2110 = vld [vmem:[%s2105 + $0x10] sm:$0xf]
    %v2111 = vld [vmem:[%s2105 + $0x14] sm:$0xf]
    %v2112 = vld [vmem:[%s2105 + $0x18] sm:$0xf]
    %v2113 = vld [vmem:[%s2105 + $0x1c] sm:$0xf]
    %v2114 = vld [vmem:[%s2105 + $0x20] sm:$0xf]
    %v2115 = vld [vmem:[%s2105 + $0x24] sm:$0xf]
    %v2116 = vld [vmem:[%s2105 + $0x28] sm:$0xf]
    %v2117 = vld [vmem:[%s2105 + $0x2c] sm:$0xf]
    %v2118 = vld [vmem:[%s2105 + $0x30] sm:$0xf]
    %v2119 = vld [vmem:[%s2105 + $0x34] sm:$0xf]
    %v2120 = vld [vmem:[%s2105 + $0x38] sm:$0xf]
    %v2121 = vld [vmem:[%s2105 + $0x3c] sm:$0xf]
    %v2122 = vld [vmem:[%s5 + $0x5] ss:$0 sm:$0xff]
    %v2123 = vpack.c.bf16 %v2104, %v2103
    %v2140 = vunpack.c.l.b16 %v2106
    %v2141 = vunpack.c.l.b16 %v2107
    %v2142 = vunpack.c.l.b16 %v2108
    %v2143 = vunpack.c.l.b16 %v2109
    %v2144 = vunpack.c.l.b16 %v2110
    %v2145 = vunpack.c.l.b16 %v2111
    %v2146 = vunpack.c.l.b16 %v2112
    %v2147 = vunpack.c.l.b16 %v2113
    %v2148 = vunpack.c.l.b16 %v2114
    %v2149 = vunpack.c.l.b16 %v2115
    %v2150 = vunpack.c.l.b16 %v2116
    %v2151 = vunpack.c.l.b16 %v2117
    %v2152 = vunpack.c.l.b16 %v2118
    %v2153 = vunpack.c.l.b16 %v2119
    %v2154 = vunpack.c.l.b16 %v2120
    %v2155 = vunpack.c.l.b16 %v2121
    %v2156 = vpack.c.b16 %v2141, %v2140
    %v2157 = vpack.c.b16 %v2143, %v2142
    %v2158 = vpack.c.b16 %v2145, %v2144
    %v2159 = vpack.c.b16 %v2147, %v2146
    %v2160 = vpack.c.b16 %v2149, %v2148
    %v2161 = vpack.c.b16 %v2151, %v2150
    %v2162 = vpack.c.b16 %v2153, %v2152
    %v2163 = vpack.c.b16 %v2155, %v2154
    %2172 = vmatprep.subr.bf16.mxu0 0
    %2173 = vmatpush1.bf16.msra.mxu0 %v2156
    %2174 = vmatprep.subr.bf16.mxu0 0
    %2175 = vmatpush1.bf16.msra.mxu0 %v2157
    %2176 = vmatprep.subr.bf16.mxu0 0
    %2177 = vmatpush1.bf16.msra.mxu0 %v2158
    %2178 = vmatprep.subr.bf16.mxu0 0
    %2179 = vmatpush1.bf16.msra.mxu0 %v2159
    %2180 = vmatprep.subr.bf16.mxu0 0
    %2181 = vmatpush1.bf16.msra.mxu0 %v2160
    %2182 = vmatprep.subr.bf16.mxu0 0
    %2183 = vmatpush1.bf16.msra.mxu0 %v2161
    %2184 = vmatprep.subr.bf16.mxu0 0
    %2185 = vmatpush1.bf16.msra.mxu0 %v2162
    %2186 = vmatprep.subr.bf16.mxu0 0
    %2187 = vmatpush1.bf16.msra.mxu0 %v2163
    %2188 = vmatprep.subr.bf16.mxu0 0
    %2189 = vmatpush1.bf16.msra.mxu0 0
    %2190 = vmatprep.subr.bf16.mxu0 0
    %2191 = vmatpush1.bf16.msra.mxu0 0
    %2192 = vmatprep.subr.bf16.mxu0 0
    %2193 = vmatpush1.bf16.msra.mxu0 0
    %2194 = vmatprep.subr.bf16.mxu0 0
    %2195 = vmatpush1.bf16.msra.mxu0 0
    %2196 = vmatprep.subr.bf16.mxu0 0
    %2197 = vmatpush1.bf16.msra.mxu0 0
    %2198 = vmatprep.subr.bf16.mxu0 0
    %2199 = vmatpush1.bf16.msra.mxu0 0
    %2200 = vmatprep.subr.bf16.mxu0 0
    %2201 = vmatpush1.bf16.msra.mxu0 0
    %2202 = vmatprep.subr.bf16.mxu0 0
    %2203 = vmatpush1.bf16.msra.mxu0 0
    %2204 = vmatprep.mubr.bf16.mxu0 0
    %2205 = vmatmul.mubr.bf16.gmra.mrb[0].mxu0 %v2123
    %v2206 = vpop.f32.mrb[0].mxu0
    %v2207 = vadd.f32 %v2122, %v2206
    %v2208 = vpop.f32.mrb[0].mxu0
    %v2209 = vpop.f32.mrb[0].mxu0
    %v2210 = vadd.f32 %v2122, %v2209
    %v2211 = vpop.f32.mrb[0].mxu0
    %2212 = vdwg.mxu0
    %v2213 = vmax.f32 %v2207, 0.0
    %v2214 = vmax.f32 %v2210, 0.0
    %s2215 = scalar_lea.vmem [#allocation6], 192
    %v2216 = vld [vmem:[%s2215] sm:$0xf]
    %v2217 = vld [vmem:[%s2215 + $0x4] sm:$0xf]
    %v2218 = vld [vmem:[%s2215 + $0x8] sm:$0xf]
    %v2219 = vld [vmem:[%s2215 + $0xc] sm:$0xf]
    %v2220 = vld [vmem:[%s2215 + $0x10] sm:$0xf]
    %v2221 = vld [vmem:[%s2215 + $0x14] sm:$0xf]
    %v2222 = vld [vmem:[%s2215 + $0x18] sm:$0xf]
    %v2223 = vld [vmem:[%s2215 + $0x1c] sm:$0xf]
    %v2224 = vld [vmem:[%s2215 + $0x20] sm:$0xf]
    %v2225 = vld [vmem:[%s2215 + $0x24] sm:$0xf]
    %v2226 = vld [vmem:[%s2215 + $0x28] sm:$0xf]
    %v2227 = vld [vmem:[%s2215 + $0x2c] sm:$0xf]
    %v2228 = vld [vmem:[%s2215 + $0x30] sm:$0xf]
    %v2229 = vld [vmem:[%s2215 + $0x34] sm:$0xf]
    %v2230 = vld [vmem:[%s2215 + $0x38] sm:$0xf]
    %v2231 = vld [vmem:[%s2215 + $0x3c] sm:$0xf]
    %v2232 = vld [vmem:[%s5 + $0x6] ss:$0 sm:$0xff]
    %v2233 = vpack.c.bf16 %v2214, %v2213
    %v2250 = vunpack.c.l.b16 %v2216
    %v2251 = vunpack.c.l.b16 %v2217
    %v2252 = vunpack.c.l.b16 %v2218
    %v2253 = vunpack.c.l.b16 %v2219
    %v2254 = vunpack.c.l.b16 %v2220
    %v2255 = vunpack.c.l.b16 %v2221
    %v2256 = vunpack.c.l.b16 %v2222
    %v2257 = vunpack.c.l.b16 %v2223
    %v2258 = vunpack.c.l.b16 %v2224
    %v2259 = vunpack.c.l.b16 %v2225
    %v2260 = vunpack.c.l.b16 %v2226
    %v2261 = vunpack.c.l.b16 %v2227
    %v2262 = vunpack.c.l.b16 %v2228
    %v2263 = vunpack.c.l.b16 %v2229
    %v2264 = vunpack.c.l.b16 %v2230
    %v2265 = vunpack.c.l.b16 %v2231
    %v2266 = vpack.c.b16 %v2251, %v2250
    %v2267 = vpack.c.b16 %v2253, %v2252
    %v2268 = vpack.c.b16 %v2255, %v2254
    %v2269 = vpack.c.b16 %v2257, %v2256
    %v2270 = vpack.c.b16 %v2259, %v2258
    %v2271 = vpack.c.b16 %v2261, %v2260
    %v2272 = vpack.c.b16 %v2263, %v2262
    %v2273 = vpack.c.b16 %v2265, %v2264
    %2282 = vmatprep.subr.bf16.mxu0 0
    %2283 = vmatpush1.bf16.msra.mxu0 %v2266
    %2284 = vmatprep.subr.bf16.mxu0 0
    %2285 = vmatpush1.bf16.msra.mxu0 %v2267
    %2286 = vmatprep.subr.bf16.mxu0 0
    %2287 = vmatpush1.bf16.msra.mxu0 %v2268
    %2288 = vmatprep.subr.bf16.mxu0 0
    %2289 = vmatpush1.bf16.msra.mxu0 %v2269
    %2290 = vmatprep.subr.bf16.mxu0 0
    %2291 = vmatpush1.bf16.msra.mxu0 %v2270
    %2292 = vmatprep.subr.bf16.mxu0 0
    %2293 = vmatpush1.bf16.msra.mxu0 %v2271
    %2294 = vmatprep.subr.bf16.mxu0 0
    %2295 = vmatpush1.bf16.msra.mxu0 %v2272
    %2296 = vmatprep.subr.bf16.mxu0 0
    %2297 = vmatpush1.bf16.msra.mxu0 %v2273
    %2298 = vmatprep.subr.bf16.mxu0 0
    %2299 = vmatpush1.bf16.msra.mxu0 0
    %2300 = vmatprep.subr.bf16.mxu0 0
    %2301 = vmatpush1.bf16.msra.mxu0 0
    %2302 = vmatprep.subr.bf16.mxu0 0
    %2303 = vmatpush1.bf16.msra.mxu0 0
    %2304 = vmatprep.subr.bf16.mxu0 0
    %2305 = vmatpush1.bf16.msra.mxu0 0
    %2306 = vmatprep.subr.bf16.mxu0 0
    %2307 = vmatpush1.bf16.msra.mxu0 0
    %2308 = vmatprep.subr.bf16.mxu0 0
    %2309 = vmatpush1.bf16.msra.mxu0 0
    %2310 = vmatprep.subr.bf16.mxu0 0
    %2311 = vmatpush1.bf16.msra.mxu0 0
    %2312 = vmatprep.subr.bf16.mxu0 0
    %2313 = vmatpush1.bf16.msra.mxu0 0
    %2314 = vmatprep.mubr.bf16.mxu0 0
    %2315 = vmatmul.mubr.bf16.gmra.mrb[0].mxu0 %v2233
    %v2316 = vpop.f32.mrb[0].mxu0
    %v2317 = vadd.f32 %v2232, %v2316
    %v2318 = vpop.f32.mrb[0].mxu0
    %v2319 = vpop.f32.mrb[0].mxu0
    %v2320 = vadd.f32 %v2232, %v2319
    %v2321 = vpop.f32.mrb[0].mxu0
    %2322 = vdwg.mxu0
    %v2323 = vmax.f32 %v2317, 0.0
    %v2324 = vmax.f32 %v2320, 0.0
    %s2325 = scalar_lea.vmem [#allocation6], 256
    %v2326 = vld [vmem:[%s2325] sm:$0xf]
    %v2327 = vld [vmem:[%s2325 + $0x4] sm:$0xf]
    %v2328 = vld [vmem:[%s2325 + $0x8] sm:$0xf]
    %v2329 = vld [vmem:[%s2325 + $0xc] sm:$0xf]
    %v2330 = vld [vmem:[%s2325 + $0x10] sm:$0xf]
    %v2331 = vld [vmem:[%s2325 + $0x14] sm:$0xf]
    %v2332 = vld [vmem:[%s2325 + $0x18] sm:$0xf]
    %v2333 = vld [vmem:[%s2325 + $0x1c] sm:$0xf]
    %v2334 = vld [vmem:[%s2325 + $0x20] sm:$0xf]
    %v2335 = vld [vmem:[%s2325 + $0x24] sm:$0xf]
    %v2336 = vld [vmem:[%s2325 + $0x28] sm:$0xf]
    %v2337 = vld [vmem:[%s2325 + $0x2c] sm:$0xf]
    %v2338 = vld [vmem:[%s2325 + $0x30] sm:$0xf]
    %v2339 = vld [vmem:[%s2325 + $0x34] sm:$0xf]
    %v2340 = vld [vmem:[%s2325 + $0x38] sm:$0xf]
    %v2341 = vld [vmem:[%s2325 + $0x3c] sm:$0xf]
    %v2342 = vld [vmem:[%s5 + $0x7] ss:$0 sm:$0xff]
    %v2343 = vpack.c.bf16 %v2324, %v2323
    %v2360 = vunpack.c.l.b16 %v2326
    %v2361 = vunpack.c.l.b16 %v2327
    %v2362 = vunpack.c.l.b16 %v2328
    %v2363 = vunpack.c.l.b16 %v2329
    %v2364 = vunpack.c.l.b16 %v2330
    %v2365 = vunpack.c.l.b16 %v2331
    %v2366 = vunpack.c.l.b16 %v2332
    %v2367 = vunpack.c.l.b16 %v2333
    %v2368 = vunpack.c.l.b16 %v2334
    %v2369 = vunpack.c.l.b16 %v2335
    %v2370 = vunpack.c.l.b16 %v2336
    %v2371 = vunpack.c.l.b16 %v2337
    %v2372 = vunpack.c.l.b16 %v2338
    %v2373 = vunpack.c.l.b16 %v2339
    %v2374 = vunpack.c.l.b16 %v2340
    %v2375 = vunpack.c.l.b16 %v2341
    %v2376 = vpack.c.b16 %v2361, %v2360
    %v2377 = vpack.c.b16 %v2363, %v2362
    %v2378 = vpack.c.b16 %v2365, %v2364
    %v2379 = vpack.c.b16 %v2367, %v2366
    %v2380 = vpack.c.b16 %v2369, %v2368
    %v2381 = vpack.c.b16 %v2371, %v2370
    %v2382 = vpack.c.b16 %v2373, %v2372
    %v2383 = vpack.c.b16 %v2375, %v2374
    %2392 = vmatprep.subr.bf16.mxu0 0
    %2393 = vmatpush1.bf16.msra.mxu0 %v2376
    %2394 = vmatprep.subr.bf16.mxu0 0
    %2395 = vmatpush1.bf16.msra.mxu0 %v2377
    %2396 = vmatprep.subr.bf16.mxu0 0
    %2397 = vmatpush1.bf16.msra.mxu0 %v2378
    %2398 = vmatprep.subr.bf16.mxu0 0
    %2399 = vmatpush1.bf16.msra.mxu0 %v2379
    %2400 = vmatprep.subr.bf16.mxu0 0
    %2401 = vmatpush1.bf16.msra.mxu0 %v2380
    %2402 = vmatprep.subr.bf16.mxu0 0
    %2403 = vmatpush1.bf16.msra.mxu0 %v2381
    %2404 = vmatprep.subr.bf16.mxu0 0
    %2405 = vmatpush1.bf16.msra.mxu0 %v2382
    %2406 = vmatprep.subr.bf16.mxu0 0
    %2407 = vmatpush1.bf16.msra.mxu0 %v2383
    %2408 = vmatprep.subr.bf16.mxu0 0
    %2409 = vmatpush1.bf16.msra.mxu0 0
    %2410 = vmatprep.subr.bf16.mxu0 0
    %2411 = vmatpush1.bf16.msra.mxu0 0
    %2412 = vmatprep.subr.bf16.mxu0 0
    %2413 = vmatpush1.bf16.msra.mxu0 0
    %2414 = vmatprep.subr.bf16.mxu0 0
    %2415 = vmatpush1.bf16.msra.mxu0 0
    %2416 = vmatprep.subr.bf16.mxu0 0
    %2417 = vmatpush1.bf16.msra.mxu0 0
    %2418 = vmatprep.subr.bf16.mxu0 0
    %2419 = vmatpush1.bf16.msra.mxu0 0
    %2420 = vmatprep.subr.bf16.mxu0 0
    %2421 = vmatpush1.bf16.msra.mxu0 0
    %2422 = vmatprep.subr.bf16.mxu0 0
    %2423 = vmatpush1.bf16.msra.mxu0 0
    %2424 = vmatprep.mubr.bf16.mxu0 0
    %2425 = vmatmul.mubr.bf16.gmra.mrb[0].mxu0 %v2343
    %v2426 = vpop.f32.mrb[0].mxu0
    %v2427 = vadd.f32 %v2342, %v2426
    %v2428 = vpop.f32.mrb[0].mxu0
    %v2429 = vpop.f32.mrb[0].mxu0
    %v2430 = vadd.f32 %v2342, %v2429
    %v2431 = vpop.f32.mrb[0].mxu0
    %2432 = vdwg.mxu0
    %v2433 = vmax.f32 %v2427, 0.0
    %v2434 = vmax.f32 %v2430, 0.0
    %s2435 = scalar_lea.vmem [#allocation6], 320
    %v2436 = vld [vmem:[%s2435] sm:$0xf]
    %v2437 = vld [vmem:[%s2435 + $0x4] sm:$0xf]
    %v2438 = vld [vmem:[%s2435 + $0x8] sm:$0xf]
    %v2439 = vld [vmem:[%s2435 + $0xc] sm:$0xf]
    %v2440 = vld [vmem:[%s2435 + $0x10] sm:$0xf]
    %v2441 = vld [vmem:[%s2435 + $0x14] sm:$0xf]
    %v2442 = vld [vmem:[%s2435 + $0x18] sm:$0xf]
    %v2443 = vld [vmem:[%s2435 + $0x1c] sm:$0xf]
    %v2444 = vld [vmem:[%s2435 + $0x20] sm:$0xf]
    %v2445 = vld [vmem:[%s2435 + $0x24] sm:$0xf]
    %v2446 = vld [vmem:[%s2435 + $0x28] sm:$0xf]
    %v2447 = vld [vmem:[%s2435 + $0x2c] sm:$0xf]
    %v2448 = vld [vmem:[%s2435 + $0x30] sm:$0xf]
    %v2449 = vld [vmem:[%s2435 + $0x34] sm:$0xf]
    %v2450 = vld [vmem:[%s2435 + $0x38] sm:$0xf]
    %v2451 = vld [vmem:[%s2435 + $0x3c] sm:$0xf]
    %v2452 = vld [vmem:[%s5 + $0x18] ss:$0 sm:$0xff]
    %v2453 = vpack.c.bf16 %v2434, %v2433
    %v2470 = vunpack.c.l.b16 %v2436
    %v2471 = vunpack.c.l.b16 %v2437
    %v2472 = vunpack.c.l.b16 %v2438
    %v2473 = vunpack.c.l.b16 %v2439
    %v2474 = vunpack.c.l.b16 %v2440
    %v2475 = vunpack.c.l.b16 %v2441
    %v2476 = vunpack.c.l.b16 %v2442
    %v2477 = vunpack.c.l.b16 %v2443
    %v2478 = vunpack.c.l.b16 %v2444
    %v2479 = vunpack.c.l.b16 %v2445
    %v2480 = vunpack.c.l.b16 %v2446
    %v2481 = vunpack.c.l.b16 %v2447
    %v2482 = vunpack.c.l.b16 %v2448
    %v2483 = vunpack.c.l.b16 %v2449
    %v2484 = vunpack.c.l.b16 %v2450
    %v2485 = vunpack.c.l.b16 %v2451
    %v2486 = vpack.c.b16 %v2471, %v2470
    %v2487 = vpack.c.b16 %v2473, %v2472
    %v2488 = vpack.c.b16 %v2475, %v2474
    %v2489 = vpack.c.b16 %v2477, %v2476
    %v2490 = vpack.c.b16 %v2479, %v2478
    %v2491 = vpack.c.b16 %v2481, %v2480
    %v2492 = vpack.c.b16 %v2483, %v2482
    %v2493 = vpack.c.b16 %v2485, %v2484
    %2502 = vmatprep.subr.bf16.mxu0 0
    %2503 = vmatpush1.bf16.msra.mxu0 %v2486
    %2504 = vmatprep.subr.bf16.mxu0 0
    %2505 = vmatpush1.bf16.msra.mxu0 %v2487
    %2506 = vmatprep.subr.bf16.mxu0 0
    %2507 = vmatpush1.bf16.msra.mxu0 %v2488
    %2508 = vmatprep.subr.bf16.mxu0 0
    %2509 = vmatpush1.bf16.msra.mxu0 %v2489
    %2510 = vmatprep.subr.bf16.mxu0 0
    %2511 = vmatpush1.bf16.msra.mxu0 %v2490
    %2512 = vmatprep.subr.bf16.mxu0 0
    %2513 = vmatpush1.bf16.msra.mxu0 %v2491
    %2514 = vmatprep.subr.bf16.mxu0 0
    %2515 = vmatpush1.bf16.msra.mxu0 %v2492
    %2516 = vmatprep.subr.bf16.mxu0 0
    %2517 = vmatpush1.bf16.msra.mxu0 %v2493
    %2518 = vmatprep.subr.bf16.mxu0 0
    %2519 = vmatpush1.bf16.msra.mxu0 0
    %2520 = vmatprep.subr.bf16.mxu0 0
    %2521 = vmatpush1.bf16.msra.mxu0 0
    %2522 = vmatprep.subr.bf16.mxu0 0
    %2523 = vmatpush1.bf16.msra.mxu0 0
    %2524 = vmatprep.subr.bf16.mxu0 0
    %2525 = vmatpush1.bf16.msra.mxu0 0
    %2526 = vmatprep.subr.bf16.mxu0 0
    %2527 = vmatpush1.bf16.msra.mxu0 0
    %2528 = vmatprep.subr.bf16.mxu0 0
    %2529 = vmatpush1.bf16.msra.mxu0 0
    %2530 = vmatprep.subr.bf16.mxu0 0
    %2531 = vmatpush1.bf16.msra.mxu0 0
    %2532 = vmatprep.subr.bf16.mxu0 0
    %2533 = vmatpush1.bf16.msra.mxu0 0
    %2534 = vmatprep.mubr.bf16.mxu0 0
    %2535 = vmatmul.mubr.bf16.gmra.mrb[0].mxu0 %v2453
    %v2536 = vpop.f32.mrb[0].mxu0
    %v2537 = vadd.f32 %v2452, %v2536
    %v2538 = vpop.f32.mrb[0].mxu0
    %v2539 = vpop.f32.mrb[0].mxu0
    %v2540 = vadd.f32 %v2452, %v2539
    %v2541 = vpop.f32.mrb[0].mxu0
    %2542 = vdwg.mxu0
    %2543 = vmax.xlane.f32.xlu0 %v2537
    %v2544 = vpop.xlane.xlu0 %2543
    %2545 = vmax.xlane.f32.xlu0 %v2540
    %v2546 = vpop.xlane.xlu0 %2545
    %v2547 = vsub.f32 %v2537, %v2544
    %v2548 = vsub.f32 %v2540, %v2546
    %v2549 = vmul.f32 %v2547, 1.442695
    %v2550 = vpow.pop %v2549
    %v2551 = vmul.f32 %v2548, 1.442695
    %v2552 = vpow.pop %v2551
    %2553 = vadd.xlane.f32.xlu0 %v2550
    %v2554 = vpop.xlane.xlu0 %2553
    %2555 = vadd.xlane.f32.xlu0 %v2552
    %v2556 = vpop.xlane.xlu0 %2555
    %v2557 = vrcp.pop %v2554
    %v2558 = vmul.f32 %v2550, %v2557
    %v2559 = vrcp.pop %v2556
    %v2560 = vmul.f32 %v2552, %v2559
    %2561 = vst [vmem:[%s6] sm:$0xff] %v2558
    %2562 = vst [vmem:[%s6 + $0x8] sm:$0xff] %v2560
    // Predicated region
    $region38: #{cd_net_forward.1} parent=1 // pred_check
      _
    $region39: #{cd_net_forward.1} parent=1 // pred_check_branch
      %2564 = sbr.rel (0) target = $region41
    $region40: #{cd_net_forward.1} parent=1 // pred_region
      _
    $region41: #{cd_net_forward.1} parent=1 // pred_fallthru
      _
    // Predicated region
    $region42: #{cd_net_forward.1} parent=1 // pred_check
      _
    $region43: #{cd_net_forward.1} parent=1 // pred_check_branch
      %2566 = sbr.rel (0) target = $region45
    $region44: #{cd_net_forward.1} parent=1 // pred_region
      _
    $region45: #{cd_net_forward.1} parent=1 // pred_fallthru
      _
    %2567 = vsyncpa [#allocation3], 1
    %2568 = vsyncpa [#allocation5], 1

</llo_original>
